<compile_context>
chip_gen: v7x
topology: tpu7x:2x2x1
jax: 0.10.0
libtpu: 0.0.40
codegen_flags: <defaults>
</compile_context>

<pallas_src>
import functools
import math

import jax
import jax.numpy as jnp
from jax.experimental import pallas as pl
from jax.experimental.pallas import tpu as pltpu


def _mab_kernel(q_ref, k_ref,
                wq_ref, bq_ref,
                wkv_ref, bkv_ref,
                wo_ref, bo_ref,
                o_ref,
                *, num_heads):
    Bb, Nq, dim_Q = q_ref.shape          # batch block handled by this grid step
    _, Nk, dim_K = k_ref.shape
    D = wq_ref.shape[1]                  # dim_V
    H = num_heads
    dv = D // H
    scale = 1.0 / math.sqrt(D)           # PyTorch MAB scales by sqrt(dim_V), not sqrt(dv)

    # --- Input projections as flat 2-D matmuls (taller M keeps the MXU fed) ---
    Qf = q_ref[...].reshape(Bb * Nq, dim_Q).astype(jnp.float32)
    Kf = k_ref[...].reshape(Bb * Nk, dim_K).astype(jnp.float32)

    Qp2 = jnp.dot(Qf, wq_ref[...], preferred_element_type=jnp.float32) + bq_ref[...]
    # Fused K/V projection: one matmul, 2*dim_V output lanes.
    KV2 = jnp.dot(Kf, wkv_ref[...], preferred_element_type=jnp.float32) + bkv_ref[...]

    Qp = Qp2.reshape(Bb, Nq, D)                       # (Bb, Nq, D)  -- also the residual term
    Kp = (KV2[:, :D] * scale).reshape(Bb, Nk, D)      # fold score scale into K (smallest tensor)
    Vp = KV2[:, D:].reshape(Bb, Nk, D)

    # --- Fold heads into the batch dim: (H*Bb, N, dv), mirroring torch.cat(x.split(dv, 2), 0) ---
    Q_ = jnp.concatenate([Qp[:, :, h * dv:(h + 1) * dv] for h in range(H)], axis=0)
    K_ = jnp.concatenate([Kp[:, :, h * dv:(h + 1) * dv] for h in range(H)], axis=0)
    V_ = jnp.concatenate([Vp[:, :, h * dv:(h + 1) * dv] for h in range(H)], axis=0)

    # --- One batched score matmul + softmax + one batched A@V (instead of 2*H tiny matmuls) ---
    S = jnp.einsum('bqd,bkd->bqk', Q_, K_, preferred_element_type=jnp.float32)   # (H*Bb, Nq, Nk)
    S = S - jnp.max(S, axis=-1, keepdims=True)
    P = jnp.exp(S)
    # approx reciprocal runs on the (otherwise idle) EUP slot instead of a VALU divide.
    A = P * pl.reciprocal(jnp.sum(P, axis=-1, keepdims=True), approx=True)
    AV = jnp.einsum('bqk,bkd->bqd', A, V_, preferred_element_type=jnp.float32)   # (H*Bb, Nq, dv)

    # --- Reassemble heads along lanes; residual is ONE full-width add (Qh + AV_h per head
    #     == Qp + concat(AV_h) over the full feature dim) ---
    O = Qp + jnp.concatenate([AV[h * Bb:(h + 1) * Bb] for h in range(H)], axis=-1)  # (Bb, Nq, D)

    # --- Output FC + ReLU + residual, again as one flat 2-D matmul ---
    O2 = O.reshape(Bb * Nq, D)
    FF = jnp.dot(O2, wo_ref[...], preferred_element_type=jnp.float32) + bo_ref[...]
    out = O2 + jnp.maximum(FF, 0.0)

    o_ref[...] = out.reshape(Bb, Nq, D).astype(o_ref.dtype)


def mab_forward(Q, K, params, *, num_heads, block_b=1):
    """Pallas MAB forward. Grid over batch blocks of size `block_b`; weights stay VMEM-resident."""
    B, Nq, dim_Q = Q.shape
    _, Nk, dim_K = K.shape
    dim_V = params['wq'].shape[1]
    assert B % block_b == 0, "block_b must divide B"
    grid = (B // block_b,)

    # Fuse fc_k / fc_v weights once in the wrapper (tiny layout plumbing, enables one wide matmul).
    wkv = jnp.concatenate([params['wk'], params['wv']], axis=1)   # (dim_K, 2*dim_V)
    bkv = jnp.concatenate([params['bk'], params['bv']], axis=1)   # (1, 2*dim_V)

    batch_map = lambda b: (b, 0, 0)
    pinned = lambda b: (0, 0)            # weights/biases: same block every step -> no re-DMA

    in_specs = [
        pl.BlockSpec((block_b, Nq, dim_Q), batch_map),
        pl.BlockSpec((block_b, Nk, dim_K), batch_map),
        pl.BlockSpec((dim_Q, dim_V), pinned), pl.BlockSpec((1, dim_V), pinned),
        pl.BlockSpec((dim_K, 2 * dim_V), pinned), pl.BlockSpec((1, 2 * dim_V), pinned),
        pl.BlockSpec((dim_V, dim_V), pinned), pl.BlockSpec((1, dim_V), pinned),
    ]
    out_specs = pl.BlockSpec((block_b, Nq, dim_V), batch_map)

    kernel = functools.partial(_mab_kernel, num_heads=num_heads)
    return pl.pallas_call(
        kernel,
        out_shape=jax.ShapeDtypeStruct((B, Nq, dim_V), jnp.float32),
        grid=grid,
        in_specs=in_specs,
        out_specs=out_specs,
        # "parallel": independent batch blocks -> v7x's two TensorCores split the grid.
        # (vmem_limit_bytes left at default: tiles here are tiny; raise it when B/Nk scale.)
        compiler_params=pltpu.CompilerParams(dimension_semantics=("parallel",)),
    )(Q, K,
      params['wq'], params['bq'],
      wkv, bkv,
      params['wo'], params['bo'])


def mab_reference(Q, K, params, *, num_heads, dim_V):
    """Pure-JAX reference mirroring the PyTorch forward."""
    Qp = jnp.einsum('bnd,dv->bnv', Q, params['wq']) + params['bq'][0]
    Kp = jnp.einsum('bnd,dv->bnv', K, params['wk']) + params['bk'][0]
    Vp = jnp.einsum('bnd,dv->bnv', K, params['wv']) + params['bv'][0]
    dv = dim_V // num_heads
    outs = []
    for h in range(num_heads):
        sl = slice(h * dv, (h + 1) * dv)
        Qh, Kh, Vh = Qp[:, :, sl], Kp[:, :, sl], Vp[:, :, sl]
        S = jnp.einsum('bqd,bkd->bqk', Qh, Kh) / math.sqrt(dim_V)  # sqrt(dim_V), per the module
        A = jax.nn.softmax(S, axis=-1)
        outs.append(Qh + jnp.einsum('bqk,bkd->bqd', A, Vh))
    O = jnp.concatenate(outs, axis=-1)
    FF = jnp.einsum('bnv,vw->bnw', O, params['wo']) + params['bo'][0]
    return O + jax.nn.relu(FF)


def init_params(key, dim_Q, dim_K, dim_V):
    ks = jax.random.split(key, 8)

    def linear(kw, kb, fan_in, fan_out):
        bound = 1.0 / math.sqrt(fan_in)
        w = jax.random.uniform(kw, (fan_in, fan_out), jnp.float32, -bound, bound)
        b = jax.random.uniform(kb, (1, fan_out), jnp.float32, -bound, bound)
        return w, b

    wq, bq = linear(ks[0], ks[1], dim_Q, dim_V)
    wk, bk = linear(ks[2], ks[3], dim_K, dim_V)
    wv, bv = linear(ks[4], ks[5], dim_K, dim_V)
    wo, bo = linear(ks[6], ks[7], dim_V, dim_V)
    return dict(wq=wq, bq=bq, wk=wk, bk=bk, wv=wv, bv=bv, wo=wo, bo=bo)


if __name__ == "__main__":
    # Small shapes consistent with the module: MAB(dim_Q=16, dim_K=16, dim_V=32, num_heads=4)
    B, Nq, Nk = 2, 8, 16
    dim_Q, dim_K, dim_V, num_heads = 16, 16, 32, 4

    key = jax.random.PRNGKey(0)
    kq, kk, kp = jax.random.split(key, 3)
    Q = jax.random.normal(kq, (B, Nq, dim_Q), jnp.float32)
    K = jax.random.normal(kk, (B, Nk, dim_K), jnp.float32)
    params = init_params(kp, dim_Q, dim_K, dim_V)

    out = mab_forward(Q, K, params, num_heads=num_heads, block_b=1)
    out = jax.block_until_ready(out)

    ref = mab_reference(Q, K, params, num_heads=num_heads, dim_V=dim_V)
    assert out.shape == (B, Nq, dim_V)
    # Tolerance loosened from 1e-5: the softmax denominator uses the EUP approximate
    # reciprocal (pl.reciprocal(approx=True)); everything else is exact f32.
    assert jnp.allclose(out, ref, rtol=2e-3, atol=2e-3), "mismatch vs JAX reference"

    print("KERNEL_OK")
</pallas_src>

<mosaic_0001>
module attributes {stable_mosaic.version = 11 : i64} {
  func.func @_mab_kernel(%arg0: i32, %arg1: memref<1x8x16xf32, #tpu.memory_space<vmem>>, %arg2: memref<1x16x16xf32, #tpu.memory_space<vmem>>, %arg3: memref<16x32xf32, #tpu.memory_space<vmem>>, %arg4: memref<1x32xf32, #tpu.memory_space<vmem>>, %arg5: memref<16x64xf32, #tpu.memory_space<vmem>>, %arg6: memref<1x64xf32, #tpu.memory_space<vmem>>, %arg7: memref<32x32xf32, #tpu.memory_space<vmem>>, %arg8: memref<1x32xf32, #tpu.memory_space<vmem>>, %arg9: memref<1x8x32xf32, #tpu.memory_space<vmem>>) attributes {dimension_semantics = [#tpu.dimension_semantics<parallel>], iteration_bounds = array<i64: 2>, scalar_prefetch = 0 : i64, scratch_operands = 0 : i64, tpu.core_type = #tpu.core_type<tc>, window_params = [{transform_indices = @transform_0, window_bounds = array<i64: 1, 8, 16>}, {transform_indices = @transform_1, window_bounds = array<i64: 1, 16, 16>}, {pipeline_mode = #tpu.pipeline_mode<synchronous>, transform_indices = @transform_2, window_bounds = array<i64: 16, 32>}, {pipeline_mode = #tpu.pipeline_mode<synchronous>, transform_indices = @transform_3, window_bounds = array<i64: 1, 32>}, {pipeline_mode = #tpu.pipeline_mode<synchronous>, transform_indices = @transform_4, window_bounds = array<i64: 16, 64>}, {pipeline_mode = #tpu.pipeline_mode<synchronous>, transform_indices = @transform_5, window_bounds = array<i64: 1, 64>}, {pipeline_mode = #tpu.pipeline_mode<synchronous>, transform_indices = @transform_6, window_bounds = array<i64: 32, 32>}, {pipeline_mode = #tpu.pipeline_mode<synchronous>, transform_indices = @transform_7, window_bounds = array<i64: 1, 32>}, {transform_indices = @transform_8, window_bounds = array<i64: 1, 8, 32>}]} {
    %c0 = arith.constant 0 : index
    %c0_0 = arith.constant 0 : index
    %c0_1 = arith.constant 0 : index
    %0 = vector.load %arg1[%c0, %c0_0, %c0_1] : memref<1x8x16xf32, #tpu.memory_space<vmem>>, vector<1x8x16xf32>
    %1 = vector.shape_cast %0 : vector<1x8x16xf32> to vector<8x16xf32>
    %c0_2 = arith.constant 0 : index
    %c0_3 = arith.constant 0 : index
    %c0_4 = arith.constant 0 : index
    %2 = vector.load %arg2[%c0_2, %c0_3, %c0_4] : memref<1x16x16xf32, #tpu.memory_space<vmem>>, vector<1x16x16xf32>
    %3 = vector.shape_cast %2 : vector<1x16x16xf32> to vector<16x16xf32>
    %c0_5 = arith.constant 0 : index
    %c0_6 = arith.constant 0 : index
    %4 = vector.load %arg3[%c0_5, %c0_6] : memref<16x32xf32, #tpu.memory_space<vmem>>, vector<16x32xf32>
    %cst = arith.constant dense<0.000000e+00> : vector<8x32xf32>
    %5 = tpu.matmul %1, %4, %cst {dimension_numbers = #tpu.dot_dimension_numbers<[1], [0], [0], [1], [0, 0, 1, 1], [], []>} : vector<8x16xf32>, vector<16x32xf32>, vector<8x32xf32> -> vector<8x32xf32>
    %c0_7 = arith.constant 0 : index
    %c0_8 = arith.constant 0 : index
    %6 = vector.load %arg4[%c0_7, %c0_8] : memref<1x32xf32, #tpu.memory_space<vmem>>, vector<1x32xf32>
    %7 = vector.broadcast %6 : vector<1x32xf32> to vector<8x32xf32>
    %8 = arith.addf %5, %7 : vector<8x32xf32>
    %c0_9 = arith.constant 0 : index
    %c0_10 = arith.constant 0 : index
    %9 = vector.load %arg5[%c0_9, %c0_10] : memref<16x64xf32, #tpu.memory_space<vmem>>, vector<16x64xf32>
    %cst_11 = arith.constant dense<0.000000e+00> : vector<16x64xf32>
    %10 = tpu.matmul %3, %9, %cst_11 {dimension_numbers = #tpu.dot_dimension_numbers<[1], [0], [0], [1], [0, 0, 1, 1], [], []>} : vector<16x16xf32>, vector<16x64xf32>, vector<16x64xf32> -> vector<16x64xf32>
    %c0_12 = arith.constant 0 : index
    %c0_13 = arith.constant 0 : index
    %11 = vector.load %arg6[%c0_12, %c0_13] : memref<1x64xf32, #tpu.memory_space<vmem>>, vector<1x64xf32>
    %12 = vector.broadcast %11 : vector<1x64xf32> to vector<16x64xf32>
    %13 = arith.addf %10, %12 : vector<16x64xf32>
    %14 = vector.shape_cast %8 : vector<8x32xf32> to vector<1x8x32xf32>
    %15 = vector.extract_strided_slice %13 {offsets = [0, 0], sizes = [16, 32], strides = [1, 1]} : vector<16x64xf32> to vector<16x32xf32>
    %cst_14 = arith.constant 0.176776692 : f32
    %16 = vector.broadcast %cst_14 : f32 to vector<16x32xf32>
    %17 = arith.mulf %15, %16 : vector<16x32xf32>
    %18 = vector.shape_cast %17 : vector<16x32xf32> to vector<1x16x32xf32>
    %19 = vector.extract_strided_slice %13 {offsets = [0, 32], sizes = [16, 32], strides = [1, 1]} : vector<16x64xf32> to vector<16x32xf32>
    %20 = vector.shape_cast %19 : vector<16x32xf32> to vector<1x16x32xf32>
    %21 = vector.extract_strided_slice %14 {offsets = [0, 0, 0], sizes = [1, 8, 8], strides = [1, 1, 1]} : vector<1x8x32xf32> to vector<1x8x8xf32>
    %22 = vector.extract_strided_slice %14 {offsets = [0, 0, 8], sizes = [1, 8, 8], strides = [1, 1, 1]} : vector<1x8x32xf32> to vector<1x8x8xf32>
    %23 = vector.extract_strided_slice %14 {offsets = [0, 0, 16], sizes = [1, 8, 8], strides = [1, 1, 1]} : vector<1x8x32xf32> to vector<1x8x8xf32>
    %24 = vector.extract_strided_slice %14 {offsets = [0, 0, 24], sizes = [1, 8, 8], strides = [1, 1, 1]} : vector<1x8x32xf32> to vector<1x8x8xf32>
    %25 = tpu.concatenate %21, %22, %23, %24 in 0 : vector<1x8x8xf32>, vector<1x8x8xf32>, vector<1x8x8xf32>, vector<1x8x8xf32> -> vector<4x8x8xf32>
    %26 = vector.extract_strided_slice %18 {offsets = [0, 0, 0], sizes = [1, 16, 8], strides = [1, 1, 1]} : vector<1x16x32xf32> to vector<1x16x8xf32>
    %27 = vector.extract_strided_slice %18 {offsets = [0, 0, 8], sizes = [1, 16, 8], strides = [1, 1, 1]} : vector<1x16x32xf32> to vector<1x16x8xf32>
    %28 = vector.extract_strided_slice %18 {offsets = [0, 0, 16], sizes = [1, 16, 8], strides = [1, 1, 1]} : vector<1x16x32xf32> to vector<1x16x8xf32>
    %29 = vector.extract_strided_slice %18 {offsets = [0, 0, 24], sizes = [1, 16, 8], strides = [1, 1, 1]} : vector<1x16x32xf32> to vector<1x16x8xf32>
    %30 = tpu.concatenate %26, %27, %28, %29 in 0 : vector<1x16x8xf32>, vector<1x16x8xf32>, vector<1x16x8xf32>, vector<1x16x8xf32> -> vector<4x16x8xf32>
    %31 = vector.extract_strided_slice %20 {offsets = [0, 0, 0], sizes = [1, 16, 8], strides = [1, 1, 1]} : vector<1x16x32xf32> to vector<1x16x8xf32>
    %32 = vector.extract_strided_slice %20 {offsets = [0, 0, 8], sizes = [1, 16, 8], strides = [1, 1, 1]} : vector<1x16x32xf32> to vector<1x16x8xf32>
    %33 = vector.extract_strided_slice %20 {offsets = [0, 0, 16], sizes = [1, 16, 8], strides = [1, 1, 1]} : vector<1x16x32xf32> to vector<1x16x8xf32>
    %34 = vector.extract_strided_slice %20 {offsets = [0, 0, 24], sizes = [1, 16, 8], strides = [1, 1, 1]} : vector<1x16x32xf32> to vector<1x16x8xf32>
    %35 = tpu.concatenate %31, %32, %33, %34 in 0 : vector<1x16x8xf32>, vector<1x16x8xf32>, vector<1x16x8xf32>, vector<1x16x8xf32> -> vector<4x16x8xf32>
    "tpu.trace_start"() <{level = 10 : i32, message = "bqd,bkd->bqk"}> : () -> ()
    %cst_15 = arith.constant dense<0.000000e+00> : vector<4x8x16xf32>
    %36 = tpu.matmul %25, %30, %cst_15 {dimension_numbers = #tpu.dot_dimension_numbers<[2], [2], [1], [1], [0, 0, 0, 1, 1, 1], [0], [0]>} : vector<4x8x8xf32>, vector<4x16x8xf32>, vector<4x8x16xf32> -> vector<4x8x16xf32>
    "tpu.trace_stop"() : () -> ()
    %cst_16 = arith.constant dense<0xFF800000> : vector<4x8xf32>
    %37 = vector.multi_reduction <maximumf>, %36, %cst_16 [2] : vector<4x8x16xf32> to vector<4x8xf32>
    %38 = vector.shape_cast %37 : vector<4x8xf32> to vector<4x8x1xf32>
    %39 = vector.broadcast %38 : vector<4x8x1xf32> to vector<4x8x16xf32>
    %40 = arith.subf %36, %39 : vector<4x8x16xf32>
    %41 = math.exp %40 : vector<4x8x16xf32>
    %cst_17 = arith.constant dense<0.000000e+00> : vector<4x8xf32>
    %42 = vector.multi_reduction <add>, %41, %cst_17 [2] : vector<4x8x16xf32> to vector<4x8xf32>
    %43 = vector.shape_cast %42 : vector<4x8xf32> to vector<4x8x1xf32>
    %44 = tpu.reciprocal %43 {approx = true} : vector<4x8x1xf32> -> vector<4x8x1xf32>
    %45 = vector.broadcast %44 : vector<4x8x1xf32> to vector<4x8x16xf32>
    %46 = arith.mulf %41, %45 : vector<4x8x16xf32>
    "tpu.trace_start"() <{level = 10 : i32, message = "bqk,bkd->bqd"}> : () -> ()
    %cst_18 = arith.constant dense<0.000000e+00> : vector<4x8x8xf32>
    %47 = tpu.matmul %46, %35, %cst_18 {dimension_numbers = #tpu.dot_dimension_numbers<[2], [1], [1], [2], [0, 0, 0, 1, 1, 2], [0], [0]>} : vector<4x8x16xf32>, vector<4x16x8xf32>, vector<4x8x8xf32> -> vector<4x8x8xf32>
    "tpu.trace_stop"() : () -> ()
    %48 = vector.extract_strided_slice %47 {offsets = [0, 0, 0], sizes = [1, 8, 8], strides = [1, 1, 1]} : vector<4x8x8xf32> to vector<1x8x8xf32>
    %49 = vector.extract_strided_slice %47 {offsets = [1, 0, 0], sizes = [1, 8, 8], strides = [1, 1, 1]} : vector<4x8x8xf32> to vector<1x8x8xf32>
    %50 = vector.extract_strided_slice %47 {offsets = [2, 0, 0], sizes = [1, 8, 8], strides = [1, 1, 1]} : vector<4x8x8xf32> to vector<1x8x8xf32>
    %51 = vector.extract_strided_slice %47 {offsets = [3, 0, 0], sizes = [1, 8, 8], strides = [1, 1, 1]} : vector<4x8x8xf32> to vector<1x8x8xf32>
    %52 = tpu.concatenate %48, %49, %50, %51 in 2 : vector<1x8x8xf32>, vector<1x8x8xf32>, vector<1x8x8xf32>, vector<1x8x8xf32> -> vector<1x8x32xf32>
    %53 = arith.addf %14, %52 : vector<1x8x32xf32>
    %54 = vector.shape_cast %53 : vector<1x8x32xf32> to vector<8x32xf32>
    %c0_19 = arith.constant 0 : index
    %c0_20 = arith.constant 0 : index
    %55 = vector.load %arg7[%c0_19, %c0_20] : memref<32x32xf32, #tpu.memory_space<vmem>>, vector<32x32xf32>
    %cst_21 = arith.constant dense<0.000000e+00> : vector<8x32xf32>
    %56 = tpu.matmul %54, %55, %cst_21 {dimension_numbers = #tpu.dot_dimension_numbers<[1], [0], [0], [1], [0, 0, 1, 1], [], []>} : vector<8x32xf32>, vector<32x32xf32>, vector<8x32xf32> -> vector<8x32xf32>
    %c0_22 = arith.constant 0 : index
    %c0_23 = arith.constant 0 : index
    %57 = vector.load %arg8[%c0_22, %c0_23] : memref<1x32xf32, #tpu.memory_space<vmem>>, vector<1x32xf32>
    %58 = vector.broadcast %57 : vector<1x32xf32> to vector<8x32xf32>
    %59 = arith.addf %56, %58 : vector<8x32xf32>
    %cst_24 = arith.constant 0.000000e+00 : f32
    %60 = vector.broadcast %cst_24 : f32 to vector<8x32xf32>
    %61 = arith.maximumf %59, %60 : vector<8x32xf32>
    %62 = arith.addf %54, %61 : vector<8x32xf32>
    %63 = vector.shape_cast %62 : vector<8x32xf32> to vector<1x8x32xf32>
    %c0_25 = arith.constant 0 : index
    %c0_26 = arith.constant 0 : index
    %c0_27 = arith.constant 0 : index
    %64 = vector.load %arg9[%c0_25, %c0_26, %c0_27] : memref<1x8x32xf32, #tpu.memory_space<vmem>>, vector<1x8x32xf32>
    tpu.vector_store %arg9[%c0_25, %c0_26, %c0_27], %63 {strides = array<i32>} : memref<1x8x32xf32, #tpu.memory_space<vmem>>, vector<1x8x32xf32>,
    return
  }
  func.func @transform_0(%arg0: i32) -> (i32, i32, i32) {
    %c0_i32 = arith.constant 0 : i32
    %c0_i32_0 = arith.constant 0 : i32
    %c0_i32_1 = arith.constant 0 : i32
    return %arg0, %c0_i32, %c0_i32_0 : i32, i32, i32
  }
  func.func @transform_1(%arg0: i32) -> (i32, i32, i32) {
    %c0_i32 = arith.constant 0 : i32
    %c0_i32_0 = arith.constant 0 : i32
    %c0_i32_1 = arith.constant 0 : i32
    return %arg0, %c0_i32, %c0_i32_0 : i32, i32, i32
  }
  func.func @transform_2(%arg0: i32) -> (i32, i32) {
    %c0_i32 = arith.constant 0 : i32
    %c0_i32_0 = arith.constant 0 : i32
    %c0_i32_1 = arith.constant 0 : i32
    return %c0_i32, %c0_i32_0 : i32, i32
  }
  func.func @transform_3(%arg0: i32) -> (i32, i32) {
    %c0_i32 = arith.constant 0 : i32
    %c0_i32_0 = arith.constant 0 : i32
    %c0_i32_1 = arith.constant 0 : i32
    return %c0_i32, %c0_i32_0 : i32, i32
  }
  func.func @transform_4(%arg0: i32) -> (i32, i32) {
    %c0_i32 = arith.constant 0 : i32
    %c0_i32_0 = arith.constant 0 : i32
    %c0_i32_1 = arith.constant 0 : i32
    return %c0_i32, %c0_i32_0 : i32, i32
  }
  func.func @transform_5(%arg0: i32) -> (i32, i32) {
    %c0_i32 = arith.constant 0 : i32
    %c0_i32_0 = arith.constant 0 : i32
    %c0_i32_1 = arith.constant 0 : i32
    return %c0_i32, %c0_i32_0 : i32, i32
  }
  func.func @transform_6(%arg0: i32) -> (i32, i32) {
    %c0_i32 = arith.constant 0 : i32
    %c0_i32_0 = arith.constant 0 : i32
    %c0_i32_1 = arith.constant 0 : i32
    return %c0_i32, %c0_i32_0 : i32, i32
  }
  func.func @transform_7(%arg0: i32) -> (i32, i32) {
    %c0_i32 = arith.constant 0 : i32
    %c0_i32_0 = arith.constant 0 : i32
    %c0_i32_1 = arith.constant 0 : i32
    return %c0_i32, %c0_i32_0 : i32, i32
  }
  func.func @transform_8(%arg0: i32) -> (i32, i32, i32) {
    %c0_i32 = arith.constant 0 : i32
    %c0_i32_0 = arith.constant 0 : i32
    %c0_i32_1 = arith.constant 0 : i32
    return %arg0, %c0_i32, %c0_i32_0 : i32, i32, i32
  }
}

</mosaic_0001>

<llo_original>
// kernel: tpu_custom_call.1
$region0: #{tpu_custom_call.1}
  #allocation0 [shape = 'u32[]', space=smem, size = 0x4, offset = 0x4, fixed_abs, tag = 'smem constant byte address 0x4 - core index']
  #allocation1 [shape = 'u32[144,128]{1,0:T(1,128)}', space=vmem, size = 0x12000, scoped, tag = 'internal scratch']
  %s0 = inlined_call_operand.hbm [shape: f32[2,8,16], index: 0, kind: input, shape index: {}]
  %s1 = inlined_call_operand.hbm [shape: f32[2,16,16], index: 1, kind: input, shape index: {}]
  %s2 = inlined_call_operand.hbm [shape: f32[16,32], index: 2, kind: input, shape index: {}]
  %s3 = inlined_call_operand.vmem [shape: f32[1,32], index: 3, kind: input, shape index: {}]
  %s4 = inlined_call_operand.hbm [shape: f32[16,64], index: 4, kind: input, shape index: {}]
  %s5 = inlined_call_operand.vmem [shape: f32[1,64], index: 5, kind: input, shape index: {}]
  %s6 = inlined_call_operand.hbm [shape: f32[32,32], index: 6, kind: input, shape index: {}]
  %s7 = inlined_call_operand.vmem [shape: f32[1,32], index: 7, kind: input, shape index: {}]
  %s8 = inlined_call_operand.hbm [shape: f32[2,8,32], index: 8, kind: output, shape index: {}]
  %s9 = sld [smem:[#allocation0]]
  $region85: #{tpu_custom_call.1} parent=0
    _
  %s11 = ssub.s32 1, %s9
  %s12 = scalar_select 0, %s11, %s9
  $region1: #{tpu_custom_call.1} parent=0
    #allocation2 [shape = 'u8[8192]{0}', space=vmem, size = 0x2000, scoped, tag = 'input window, operand 0']
    #allocation3 [shape = 's32[2]{0}', space=sflag, size = 0x8, scoped, tag = 'scoped memory for tpu_custom_call.1']
    #allocation4 [shape = 's32[2]{0}', space=sflag, size = 0x8, scoped, tag = 'scoped memory for tpu_custom_call.1']
    #allocation5 [shape = 'u8[16384]{0}', space=vmem, size = 0x4000, scoped, tag = 'input window, operand 1']
    #allocation6 [shape = 's32[2]{0}', space=sflag, size = 0x8, scoped, tag = 'scoped memory for tpu_custom_call.1']
    #allocation7 [shape = 'u8[8192]{0}', space=vmem, size = 0x2000, scoped, tag = 'input window, operand 2, single buffered']
    #allocation8 [shape = 'u8[8192]{0}', space=vmem, size = 0x2000, scoped, tag = 'input window, operand 4, single buffered']
    #allocation9 [shape = 's32[1]{0}', space=sflag, size = 0x4, scoped, tag = 'scoped memory for tpu_custom_call.1']
    #allocation10 [shape = 'u8[16384]{0}', space=vmem, size = 0x4000, scoped, tag = 'input window, operand 6, single buffered']
    #allocation11 [shape = 'u8[8192]{0}', space=vmem, size = 0x2000, scoped, tag = 'output window, operand 0']
    %13 = vsyncpa [#allocation3], 0
    %s14 = scalar_lea.sflag [#allocation3], 1
    %15 = vsyncpa %s14, 0
    %16 = vsyncpa [#allocation6], 0
    %s17 = scalar_lea.sflag [#allocation6], 1
    %18 = vsyncpa %s17, 0
    %19 = vsyncpa [#allocation9], 0
    %20 = vsyncpa [#allocation4], 0
    %s21 = scalar_lea.sflag [#allocation4], 1
    %22 = vsyncpa %s21, 0
    loop: start=0, step=1, limit=4
    $region2: #{tpu_custom_call.1} parent=1 // loop_pre_header
      _
    $region3: #{tpu_custom_call.1} parent=1 // loop_header
      %s24 = sphi 0, %s28
      %p25 = scmp.ge.s32.totalorder %s24, 4
      %s34 = sphi 0, %s36
      %s37 = sphi 0, %s34
      %s38 = sphi 0, %s37
      %s54 = sphi 0, %s38
      %s60 = sphi 0, %s62
      %s63 = sphi 0, %s60
      %s64 = sphi 0, %s63
      %s80 = sphi 0, %s64
      %s84 = sphi 0, %s84
      %s86 = sphi 0, %s84
      %s87 = sphi 0, %s86
      %s101 = sphi 0, %s87
      %s105 = sphi 0, %s105
      %s107 = sphi 0, %s105
      %s108 = sphi 0, %s107
      %s122 = sphi 0, %s108
      %s126 = sphi 0, %s126
      %s128 = sphi 0, %s126
      %s129 = sphi 0, %s128
      %s143 = sphi 0, %s129
      %s147 = sphi 0, %s147
      %s149 = sphi 0, %s147
      %s150 = sphi 0, %s149
      %s164 = sphi 0, %s150
      %s168 = sphi 0, %s168
      %s170 = sphi 0, %s168
      %s171 = sphi 0, %s170
      %s185 = sphi 0, %s171
      %s189 = sphi 0, %s189
      %s191 = sphi 0, %s189
      %s192 = sphi 0, %s191
      %s206 = sphi 0, %s192
      %s212 = sphi 0, %s214
      %s215 = sphi 0, %s212
      %s216 = sphi 0, %s215
      %s232 = sphi 0, %s216
    $region4: #{tpu_custom_call.1} parent=1 // loop_header_branch
      %27 = sbr.rel (%p25) target = $region8
    $region5: #{tpu_custom_call.1} parent=1 // loop_body
      %s29 = ssub.s32 %s24, 1
      %s30 = ssub.s32 %s24, 2
      %s31 = sadd.s32 %s24, 1
      %s32 = ssub.s32 %s24, %s31
      %p33 = scmp.eq.s32.totalorder %s32, 0
      %s35 = sadd.s32 %s34, 1
      %s36 = scalar_select %p33, %s34, %s35
      %p39 = pneg %p33
      %p40 = scmp.eq.s32.totalorder %s24, 1
      %p41 = por %p39, %p40
      %p42 = scmp.ne.s32.totalorder %s34, %s37
      %p43 = scmp.eq.s32.totalorder %s24, 0
      %p44 = por %p42, %p43
      %p45 = scmp.ne.s32.totalorder %s34, %s37
      %p46 = scmp.eq.s32.totalorder %s29, 1
      %p47 = por %p45, %p46
      %p48 = scmp.ne.s32.totalorder %s37, %s38
      %p49 = scmp.eq.s32.totalorder %s29, 0
      %p50 = por %p48, %p49
      %p51 = scmp.ne.s32.totalorder %s37, %s38
      %p52 = scmp.eq.s32.totalorder %s30, 1
      %p53 = por %p51, %p52
      %p55 = scmp.ne.s32.totalorder %s38, %s54
      %p56 = scmp.eq.s32.totalorder %s30, 0
      %p57 = por %p55, %p56
      %s58 = ssub.s32 %s24, %s31
      %p59 = scmp.eq.s32.totalorder %s58, 0
      %s61 = sadd.s32 %s60, 1
      %s62 = scalar_select %p59, %s60, %s61
      %p65 = pneg %p59
      %p66 = scmp.eq.s32.totalorder %s24, 1
      %p67 = por %p65, %p66
      %p68 = scmp.ne.s32.totalorder %s60, %s63
      %p69 = scmp.eq.s32.totalorder %s24, 0
      %p70 = por %p68, %p69
      %p71 = scmp.ne.s32.totalorder %s60, %s63
      %p72 = scmp.eq.s32.totalorder %s29, 1
      %p73 = por %p71, %p72
      %p74 = scmp.ne.s32.totalorder %s63, %s64
      %p75 = scmp.eq.s32.totalorder %s29, 0
      %p76 = por %p74, %p75
      %p77 = scmp.ne.s32.totalorder %s63, %s64
      %p78 = scmp.eq.s32.totalorder %s30, 1
      %p79 = por %p77, %p78
      %p81 = scmp.ne.s32.totalorder %s64, %s80
      %p82 = scmp.eq.s32.totalorder %s30, 0
      %p83 = por %p81, %p82
      %s85 = sadd.s32 %s84, 1
      %p88 = scmp.eq.s32.totalorder %s24, 1
      %p89 = scmp.ne.s32.totalorder %s84, %s86
      %p90 = scmp.eq.s32.totalorder %s24, 0
      %p91 = por %p89, %p90
      %p92 = scmp.ne.s32.totalorder %s84, %s86
      %p93 = scmp.eq.s32.totalorder %s29, 1
      %p94 = por %p92, %p93
      %p95 = scmp.ne.s32.totalorder %s86, %s87
      %p96 = scmp.eq.s32.totalorder %s29, 0
      %p97 = por %p95, %p96
      %p98 = scmp.ne.s32.totalorder %s86, %s87
      %p99 = scmp.eq.s32.totalorder %s30, 1
      %p100 = por %p98, %p99
      %p102 = scmp.ne.s32.totalorder %s87, %s101
      %p103 = scmp.eq.s32.totalorder %s30, 0
      %p104 = por %p102, %p103
      %s106 = sadd.s32 %s105, 1
      %p109 = scmp.eq.s32.totalorder %s24, 1
      %p110 = scmp.ne.s32.totalorder %s105, %s107
      %p111 = scmp.eq.s32.totalorder %s24, 0
      %p112 = por %p110, %p111
      %p113 = scmp.ne.s32.totalorder %s105, %s107
      %p114 = scmp.eq.s32.totalorder %s29, 1
      %p115 = por %p113, %p114
      %p116 = scmp.ne.s32.totalorder %s107, %s108
      %p117 = scmp.eq.s32.totalorder %s29, 0
      %p118 = por %p116, %p117
      %p119 = scmp.ne.s32.totalorder %s107, %s108
      %p120 = scmp.eq.s32.totalorder %s30, 1
      %p121 = por %p119, %p120
      %p123 = scmp.ne.s32.totalorder %s108, %s122
      %p124 = scmp.eq.s32.totalorder %s30, 0
      %p125 = por %p123, %p124
      %s127 = sadd.s32 %s126, 1
      %p130 = scmp.eq.s32.totalorder %s24, 1
      %p131 = scmp.ne.s32.totalorder %s126, %s128
      %p132 = scmp.eq.s32.totalorder %s24, 0
      %p133 = por %p131, %p132
      %p134 = scmp.ne.s32.totalorder %s126, %s128
      %p135 = scmp.eq.s32.totalorder %s29, 1
      %p136 = por %p134, %p135
      %p137 = scmp.ne.s32.totalorder %s128, %s129
      %p138 = scmp.eq.s32.totalorder %s29, 0
      %p139 = por %p137, %p138
      %p140 = scmp.ne.s32.totalorder %s128, %s129
      %p141 = scmp.eq.s32.totalorder %s30, 1
      %p142 = por %p140, %p141
      %p144 = scmp.ne.s32.totalorder %s129, %s143
      %p145 = scmp.eq.s32.totalorder %s30, 0
      %p146 = por %p144, %p145
      %s148 = sadd.s32 %s147, 1
      %p151 = scmp.eq.s32.totalorder %s24, 1
      %p152 = scmp.ne.s32.totalorder %s147, %s149
      %p153 = scmp.eq.s32.totalorder %s24, 0
      %p154 = por %p152, %p153
      %p155 = scmp.ne.s32.totalorder %s147, %s149
      %p156 = scmp.eq.s32.totalorder %s29, 1
      %p157 = por %p155, %p156
      %p158 = scmp.ne.s32.totalorder %s149, %s150
      %p159 = scmp.eq.s32.totalorder %s29, 0
      %p160 = por %p158, %p159
      %p161 = scmp.ne.s32.totalorder %s149, %s150
      %p162 = scmp.eq.s32.totalorder %s30, 1
      %p163 = por %p161, %p162
      %p165 = scmp.ne.s32.totalorder %s150, %s164
      %p166 = scmp.eq.s32.totalorder %s30, 0
      %p167 = por %p165, %p166
      %s169 = sadd.s32 %s168, 1
      %p172 = scmp.eq.s32.totalorder %s24, 1
      %p173 = scmp.ne.s32.totalorder %s168, %s170
      %p174 = scmp.eq.s32.totalorder %s24, 0
      %p175 = por %p173, %p174
      %p176 = scmp.ne.s32.totalorder %s168, %s170
      %p177 = scmp.eq.s32.totalorder %s29, 1
      %p178 = por %p176, %p177
      %p179 = scmp.ne.s32.totalorder %s170, %s171
      %p180 = scmp.eq.s32.totalorder %s29, 0
      %p181 = por %p179, %p180
      %p182 = scmp.ne.s32.totalorder %s170, %s171
      %p183 = scmp.eq.s32.totalorder %s30, 1
      %p184 = por %p182, %p183
      %p186 = scmp.ne.s32.totalorder %s171, %s185
      %p187 = scmp.eq.s32.totalorder %s30, 0
      %p188 = por %p186, %p187
      %s190 = sadd.s32 %s189, 1
      %p193 = scmp.eq.s32.totalorder %s24, 1
      %p194 = scmp.ne.s32.totalorder %s189, %s191
      %p195 = scmp.eq.s32.totalorder %s24, 0
      %p196 = por %p194, %p195
      %p197 = scmp.ne.s32.totalorder %s189, %s191
      %p198 = scmp.eq.s32.totalorder %s29, 1
      %p199 = por %p197, %p198
      %p200 = scmp.ne.s32.totalorder %s191, %s192
      %p201 = scmp.eq.s32.totalorder %s29, 0
      %p202 = por %p200, %p201
      %p203 = scmp.ne.s32.totalorder %s191, %s192
      %p204 = scmp.eq.s32.totalorder %s30, 1
      %p205 = por %p203, %p204
      %p207 = scmp.ne.s32.totalorder %s192, %s206
      %p208 = scmp.eq.s32.totalorder %s30, 0
      %p209 = por %p207, %p208
      %s210 = ssub.s32 %s24, %s31
      %p211 = scmp.eq.s32.totalorder %s210, 0
      %s213 = sadd.s32 %s212, 1
      %s214 = scalar_select %p211, %s212, %s213
      %p217 = pneg %p211
      %p218 = scmp.eq.s32.totalorder %s24, 1
      %p219 = por %p217, %p218
      %p220 = scmp.ne.s32.totalorder %s212, %s215
      %p221 = scmp.eq.s32.totalorder %s24, 0
      %p222 = por %p220, %p221
      %p223 = scmp.ne.s32.totalorder %s212, %s215
      %p224 = scmp.eq.s32.totalorder %s29, 1
      %p225 = por %p223, %p224
      %p226 = scmp.ne.s32.totalorder %s215, %s216
      %p227 = scmp.eq.s32.totalorder %s29, 0
      %p228 = por %p226, %p227
      %p229 = scmp.ne.s32.totalorder %s215, %s216
      %p230 = scmp.eq.s32.totalorder %s30, 1
      %p231 = por %p229, %p230
      %p233 = scmp.ne.s32.totalorder %s216, %s232
      %p234 = scmp.eq.s32.totalorder %s30, 0
      %p235 = por %p233, %p234
      %p236 = scmp.le.s32.totalorder 1, %s24
      %p237 = scmp.lt.s32.totalorder %s24, 3
      %p238 = pnand %p236, %p237
      %p239 = pneg %p238
      // Predicated region
      $region9: #{tpu_custom_call.1} parent=5 // pred_check
        _
      $region10: #{tpu_custom_call.1} parent=5 // pred_check_branch
        %241 = sbr.rel (%p238) target = $region12
      $region11: #{tpu_custom_call.1} parent=5 // pred_region
        %s242 = ssub.s32 %s24, 1
        // Predicated region
        $region13: #{tpu_custom_call.1} parent=11 // pred_check
          %p243 = pneg %p97
        $region14: #{tpu_custom_call.1} parent=11 // pred_check_branch
          %245 = sbr.rel (%p243) target = $region16
        $region15: #{tpu_custom_call.1} parent=11 // pred_region
          %s247 = ssub.s32 256, 256
          %248 = vsyncadd [#allocation6], %s247
          %s249 = sshll.u32 [#allocation7], 4
          %s250 = int_to_ptr.vmem [resolvable:$true] %s249
          %255 = dma.hbm_to_vmem [thread:$0]  %s2, 256, %s250, [#allocation6], 128, 128, 8
        $region16: #{tpu_custom_call.1} parent=11 // pred_fallthru
          _
        // Predicated region
        $region17: #{tpu_custom_call.1} parent=11 // pred_check
          %p256 = pneg %p118
        $region18: #{tpu_custom_call.1} parent=11 // pred_check_branch
          %258 = sbr.rel (%p256) target = $region20
        $region19: #{tpu_custom_call.1} parent=11 // pred_region
          _
        $region20: #{tpu_custom_call.1} parent=11 // pred_fallthru
          _
        // Predicated region
        $region21: #{tpu_custom_call.1} parent=11 // pred_check
          %p259 = pneg %p139
        $region22: #{tpu_custom_call.1} parent=11 // pred_check_branch
          %261 = sbr.rel (%p259) target = $region24
        $region23: #{tpu_custom_call.1} parent=11 // pred_region
          %s263 = ssub.s32 256, 256
          %264 = vsyncadd [#allocation9], %s263
          %s265 = sshll.u32 [#allocation8], 4
          %s266 = int_to_ptr.vmem [resolvable:$true] %s265
          %271 = dma.hbm_to_vmem [thread:$0]  %s4, 256, %s266, [#allocation9], 128, 128, 8
        $region24: #{tpu_custom_call.1} parent=11 // pred_fallthru
          _
        // Predicated region
        $region25: #{tpu_custom_call.1} parent=11 // pred_check
          %p272 = pneg %p160
        $region26: #{tpu_custom_call.1} parent=11 // pred_check_branch
          %274 = sbr.rel (%p272) target = $region28
        $region27: #{tpu_custom_call.1} parent=11 // pred_region
          _
        $region28: #{tpu_custom_call.1} parent=11 // pred_fallthru
          _
        // Predicated region
        $region29: #{tpu_custom_call.1} parent=11 // pred_check
          %p275 = pneg %p181
        $region30: #{tpu_custom_call.1} parent=11 // pred_check_branch
          %277 = sbr.rel (%p275) target = $region32
        $region31: #{tpu_custom_call.1} parent=11 // pred_region
          %s279 = ssub.s32 512, 512
          %280 = vsyncadd [#allocation9], %s279
          %s281 = sshll.u32 [#allocation10], 4
          %s282 = int_to_ptr.vmem [resolvable:$true] %s281
          %287 = dma.hbm_to_vmem [thread:$0]  %s6, 512, %s282, [#allocation9], 128, 128, 8
        $region32: #{tpu_custom_call.1} parent=11 // pred_fallthru
          _
        // Predicated region
        $region33: #{tpu_custom_call.1} parent=11 // pred_check
          %p288 = pneg %p202
        $region34: #{tpu_custom_call.1} parent=11 // pred_check_branch
          %290 = sbr.rel (%p288) target = $region36
        $region35: #{tpu_custom_call.1} parent=11 // pred_region
          _
        $region36: #{tpu_custom_call.1} parent=11 // pred_fallthru
          _
      $region12: #{tpu_custom_call.1} parent=5 // pred_fallthru
        _
      %p291 = scmp.lt.s32.totalorder %s24, 2
      // Predicated region
      $region37: #{tpu_custom_call.1} parent=5 // pred_check
        %p292 = pneg %p291
      $region38: #{tpu_custom_call.1} parent=5 // pred_check_branch
        %294 = sbr.rel (%p292) target = $region40
      $region39: #{tpu_custom_call.1} parent=5 // pred_region
        // Predicated region
        $region41: #{tpu_custom_call.1} parent=39 // pred_check
          %p295 = pneg %p44
        $region42: #{tpu_custom_call.1} parent=39 // pred_check_branch
          %297 = sbr.rel (%p295) target = $region44
        $region43: #{tpu_custom_call.1} parent=39 // pred_region
          %s298 = sand.u32 %s34, 1
          %s299 = scalar_lea.sflag [#allocation3], %s298
          %s300 = sand.u32 %s34, 1
          %s301 = smul.addr %s300, 8
          %s302 = scalar_lea.vmem [#allocation2], %s301
          %s304 = ssub.s32 128, 128
          %305 = vsyncadd %s299, %s304
          %s306 = smul.addr %s24, 128
          %s307 = scalar_lea.hbm %s0, %s306
          %s309 = sshll.u32 %s302, 4
          %s310 = int_to_ptr.vmem [resolvable:$true] %s309
          %312 = dma.hbm_to_vmem [thread:$0]  %s307, 128, %s310, %s299
        $region44: #{tpu_custom_call.1} parent=39 // pred_fallthru
          _
        // Predicated region
        $region45: #{tpu_custom_call.1} parent=39 // pred_check
          %p313 = pneg %p70
        $region46: #{tpu_custom_call.1} parent=39 // pred_check_branch
          %315 = sbr.rel (%p313) target = $region48
        $region47: #{tpu_custom_call.1} parent=39 // pred_region
          %s316 = sand.u32 %s24, 1
          %s317 = scalar_lea.sflag [#allocation6], %s316
          %s318 = sand.u32 %s60, 1
          %s319 = smul.addr %s318, 16
          %s320 = scalar_lea.vmem [#allocation5], %s319
          %s322 = ssub.s32 256, 256
          %323 = vsyncadd %s317, %s322
          %s324 = smul.addr %s24, 2
          %s325 = smul.addr %s324, 128
          %s326 = scalar_lea.hbm %s1, %s325
          %s327 = sshll.u32 %s320, 4
          %s328 = int_to_ptr.vmem [resolvable:$true] %s327
          %333 = dma.hbm_to_vmem [thread:$0]  %s326, 256, %s328, %s317, 128, 128, 8
        $region48: #{tpu_custom_call.1} parent=39 // pred_fallthru
          _
      $region40: #{tpu_custom_call.1} parent=5 // pred_fallthru
        _
      %p334 = scmp.le.s32.totalorder 1, %s24
      %p335 = scmp.lt.s32.totalorder %s24, 3
      %p336 = pnand %p334, %p335
      %p337 = pneg %p336
      // Predicated region
      $region49: #{tpu_custom_call.1} parent=5 // pred_check
        _
      $region50: #{tpu_custom_call.1} parent=5 // pred_check_branch
        %339 = sbr.rel (%p336) target = $region52
      $region51: #{tpu_custom_call.1} parent=5 // pred_region
        %s340 = ssub.s32 %s24, 1
        %s341 = sand.u32 %s37, 1
        %s342 = scalar_lea.sflag [#allocation3], %s341
        %s343 = sand.u32 %s37, 1
        %s344 = smul.addr %s343, 8
        %s345 = scalar_lea.vmem [#allocation2], %s344
        // Predicated region
        $region53: #{tpu_custom_call.1} parent=51 // pred_check
          %p346 = pneg %p50
        $region54: #{tpu_custom_call.1} parent=51 // pred_check_branch
          %348 = sbr.rel (%p346) target = $region56
        $region55: #{tpu_custom_call.1} parent=51 // pred_region
          %349 = dma.done %s342, 128
        $region56: #{tpu_custom_call.1} parent=51 // pred_fallthru
          _
        %s350 = sand.u32 %s29, 1
        %s351 = scalar_lea.sflag [#allocation6], %s350
        %s352 = sand.u32 %s63, 1
        %s353 = smul.addr %s352, 16
        %s354 = scalar_lea.vmem [#allocation5], %s353
        // Predicated region
        $region57: #{tpu_custom_call.1} parent=51 // pred_check
          %p355 = pneg %p76
        $region58: #{tpu_custom_call.1} parent=51 // pred_check_branch
          %357 = sbr.rel (%p355) target = $region60
        $region59: #{tpu_custom_call.1} parent=51 // pred_region
          %358 = dma.done %s351, 256
        $region60: #{tpu_custom_call.1} parent=51 // pred_fallthru
          _
        // Predicated region
        $region61: #{tpu_custom_call.1} parent=51 // pred_check
          %p359 = pneg %p97
        $region62: #{tpu_custom_call.1} parent=51 // pred_check_branch
          %361 = sbr.rel (%p359) target = $region64
        $region63: #{tpu_custom_call.1} parent=51 // pred_region
          %362 = dma.done [#allocation6], 256
        $region64: #{tpu_custom_call.1} parent=51 // pred_fallthru
          _
        // Predicated region
        $region65: #{tpu_custom_call.1} parent=51 // pred_check
          %p363 = pneg %p139
        $region66: #{tpu_custom_call.1} parent=51 // pred_check_branch
          %365 = sbr.rel (%p363) target = $region68
        $region67: #{tpu_custom_call.1} parent=51 // pred_region
          %366 = dma.done [#allocation9], 256
        $region68: #{tpu_custom_call.1} parent=51 // pred_fallthru
          _
        // Predicated region
        $region69: #{tpu_custom_call.1} parent=51 // pred_check
          %p367 = pneg %p181
        $region70: #{tpu_custom_call.1} parent=51 // pred_check_branch
          %369 = sbr.rel (%p367) target = $region72
        $region71: #{tpu_custom_call.1} parent=51 // pred_region
          %370 = dma.done [#allocation9], 512
        $region72: #{tpu_custom_call.1} parent=51 // pred_fallthru
          _
        %s371 = sand.u32 %s37, 1
        %s372 = scalar_lea.sflag [#allocation3], %s371
        %s373 = sand.u32 %s37, 1
        %s374 = smul.addr %s373, 8
        %s375 = scalar_lea.vmem [#allocation2], %s374
        %p376 = pneg %p50
        %p377 = pneg %p47
        %s378 = sand.u32 %s29, 1
        %s379 = scalar_lea.sflag [#allocation6], %s378
        %s380 = sand.u32 %s63, 1
        %s381 = smul.addr %s380, 16
        %s382 = scalar_lea.vmem [#allocation5], %s381
        %p383 = pneg %p76
        %p384 = pneg %p73
        %p385 = pneg %p97
        %p386 = pneg %p94
        %p387 = pneg %p118
        %p388 = pneg %p115
        %p389 = pneg %p139
        %p390 = pneg %p136
        %p391 = pneg %p160
        %p392 = pneg %p157
        %p393 = pneg %p181
        %p394 = pneg %p178
        %p395 = pneg %p202
        %p396 = pneg %p199
        %p397 = pneg %p228
        %p398 = pneg %p225
        %s399 = sand.u32 %s215, 1
        %s400 = scalar_lea.sflag [#allocation4], %s399
        %s401 = sand.u32 %s215, 1
        %s402 = smul.addr %s401, 8
        %s403 = scalar_lea.vmem [#allocation11], %s402
        %v404 = vld [vmem:[%s345] sm:$0xff]
        %v405 = vld [vmem:[%s354] sm:$0xff]
        %v406 = vld [vmem:[%s354 + $0x8] sm:$0xff]
        %v407 = vld [vmem:[#allocation7] sm:$0xff]
        %v408 = vld [vmem:[#allocation7 + $0x8] sm:$0xff]
        %v409 = vld [vmem:[%s3] sm:$0x1]
        %v411 = vlaneseq
        %v412 = vshrl.u32 %v411, 7
        %v413 = vsub.s32 0, %v412
        %v414 = vrot.slane %v409, %v413
        %vm416 = vcmask 130048
        %v418 = vsel %vm416, %v404, 0
        %420 = vmatprep.subr.mxu0 0.0
        %421 = vmatpush1.msra.mxu0 %v407
        %422 = vmatprep.subr.mxu0 0.0
        %423 = vmatpush1.msra.mxu0 %v408
        %424 = vmatprep.subr.mxu0 0.0
        %425 = vmatpush1.msra.mxu0 0.0
        %426 = vmatprep.subr.mxu0 0.0
        %427 = vmatpush1.msra.mxu0 0.0
        %428 = vmatprep.subr.mxu0 0.0
        %429 = vmatpush1.msra.mxu0 0.0
        %430 = vmatprep.subr.mxu0 0.0
        %431 = vmatpush1.msra.mxu0 0.0
        %432 = vmatprep.subr.mxu0 0.0
        %433 = vmatpush1.msra.mxu0 0.0
        %434 = vmatprep.subr.mxu0 0.0
        %435 = vmatpush1.msra.mxu0 0.0
        %436 = vmatprep.subr.mxu0 0.0
        %437 = vmatpush1.msra.mxu0 0.0
        %438 = vmatprep.subr.mxu0 0.0
        %439 = vmatpush1.msra.mxu0 0.0
        %440 = vmatprep.subr.mxu0 0.0
        %441 = vmatpush1.msra.mxu0 0.0
        %442 = vmatprep.subr.mxu0 0.0
        %443 = vmatpush1.msra.mxu0 0.0
        %444 = vmatprep.subr.mxu0 0.0
        %445 = vmatpush1.msra.mxu0 0.0
        %446 = vmatprep.subr.mxu0 0.0
        %447 = vmatpush1.msra.mxu0 0.0
        %448 = vmatprep.subr.mxu0 0.0
        %449 = vmatpush1.msra.mxu0 0.0
        %450 = vmatprep.subr.mxu0 0.0
        %451 = vmatpush1.msra.mxu0 0.0
        %452 = vmatprep.subr.mxu0 0.0
        %453 = vmatpush1.msra.mxu0 0.0
        %454 = vmatprep.subr.mxu0 0.0
        %455 = vmatpush1.msra.mxu0 0.0
        %456 = vmatprep.subr.mxu0 0.0
        %457 = vmatpush1.msra.mxu0 0.0
        %458 = vmatprep.subr.mxu0 0.0
        %459 = vmatpush1.msra.mxu0 0.0
        %460 = vmatprep.subr.mxu0 0.0
        %461 = vmatpush1.msra.mxu0 0.0
        %462 = vmatprep.subr.mxu0 0.0
        %463 = vmatpush1.msra.mxu0 0.0
        %464 = vmatprep.subr.mxu0 0.0
        %465 = vmatpush1.msra.mxu0 0.0
        %466 = vmatprep.subr.mxu0 0.0
        %467 = vmatpush1.msra.mxu0 0.0
        %468 = vmatprep.subr.mxu0 0.0
        %469 = vmatpush1.msra.mxu0 0.0
        %470 = vmatprep.subr.mxu0 0.0
        %471 = vmatpush1.msra.mxu0 0.0
        %472 = vmatprep.subr.mxu0 0.0
        %473 = vmatpush1.msra.mxu0 0.0
        %474 = vmatprep.subr.mxu0 0.0
        %475 = vmatpush1.msra.mxu0 0.0
        %476 = vmatprep.subr.mxu0 0.0
        %477 = vmatpush1.msra.mxu0 0.0
        %478 = vmatprep.subr.mxu0 0.0
        %479 = vmatpush1.msra.mxu0 0.0
        %480 = vmatprep.subr.mxu0 0.0
        %481 = vmatpush1.msra.mxu0 0.0
        %482 = vmatprep.subr.mxu0 0.0
        %483 = vmatpush1.msra.mxu0 0.0
        %484 = vmatprep.mubr.f32.mxu0 0.0
        %485 = vmatmul.mubr.f32.gmra.mrb[0].mxu0 %v418
        %v486 = vpop.f32.mrb[0].mxu0
        %v487 = vadd.f32 %v414, %v486
        %v488 = vpop.f32.mrb[0].mxu0
        %489 = vdwg.mxu0
        %v490 = vld [vmem:[#allocation8] sm:$0xff]
        %v491 = vld [vmem:[#allocation8 + $0x8] sm:$0xff]
        %v492 = vld [vmem:[%s5] sm:$0x1]
        %v494 = vlaneseq
        %v495 = vshrl.u32 %v494, 7
        %v496 = vsub.s32 0, %v495
        %v497 = vrot.slane %v492, %v496
        %v500 = vsel %vm416, %v405, 0
        %v503 = vsel %vm416, %v406, 0
        %505 = vmatprep.subr.mxu0 0.0
        %506 = vmatpush1.msra.mxu0 %v490
        %507 = vmatprep.subr.mxu0 0.0
        %508 = vmatpush1.msra.mxu0 %v491
        %509 = vmatprep.subr.mxu0 0.0
        %510 = vmatpush1.msra.mxu0 0.0
        %511 = vmatprep.subr.mxu0 0.0
        %512 = vmatpush1.msra.mxu0 0.0
        %513 = vmatprep.subr.mxu0 0.0
        %514 = vmatpush1.msra.mxu0 0.0
        %515 = vmatprep.subr.mxu0 0.0
        %516 = vmatpush1.msra.mxu0 0.0
        %517 = vmatprep.subr.mxu0 0.0
        %518 = vmatpush1.msra.mxu0 0.0
        %519 = vmatprep.subr.mxu0 0.0
        %520 = vmatpush1.msra.mxu0 0.0
        %521 = vmatprep.subr.mxu0 0.0
        %522 = vmatpush1.msra.mxu0 0.0
        %523 = vmatprep.subr.mxu0 0.0
        %524 = vmatpush1.msra.mxu0 0.0
        %525 = vmatprep.subr.mxu0 0.0
        %526 = vmatpush1.msra.mxu0 0.0
        %527 = vmatprep.subr.mxu0 0.0
        %528 = vmatpush1.msra.mxu0 0.0
        %529 = vmatprep.subr.mxu0 0.0
        %530 = vmatpush1.msra.mxu0 0.0
        %531 = vmatprep.subr.mxu0 0.0
        %532 = vmatpush1.msra.mxu0 0.0
        %533 = vmatprep.subr.mxu0 0.0
        %534 = vmatpush1.msra.mxu0 0.0
        %535 = vmatprep.subr.mxu0 0.0
        %536 = vmatpush1.msra.mxu0 0.0
        %537 = vmatprep.subr.mxu0 0.0
        %538 = vmatpush1.msra.mxu0 0.0
        %539 = vmatprep.subr.mxu0 0.0
        %540 = vmatpush1.msra.mxu0 0.0
        %541 = vmatprep.subr.mxu0 0.0
        %542 = vmatpush1.msra.mxu0 0.0
        %543 = vmatprep.subr.mxu0 0.0
        %544 = vmatpush1.msra.mxu0 0.0
        %545 = vmatprep.subr.mxu0 0.0
        %546 = vmatpush1.msra.mxu0 0.0
        %547 = vmatprep.subr.mxu0 0.0
        %548 = vmatpush1.msra.mxu0 0.0
        %549 = vmatprep.subr.mxu0 0.0
        %550 = vmatpush1.msra.mxu0 0.0
        %551 = vmatprep.subr.mxu0 0.0
        %552 = vmatpush1.msra.mxu0 0.0
        %553 = vmatprep.subr.mxu0 0.0
        %554 = vmatpush1.msra.mxu0 0.0
        %555 = vmatprep.subr.mxu0 0.0
        %556 = vmatpush1.msra.mxu0 0.0
        %557 = vmatprep.subr.mxu0 0.0
        %558 = vmatpush1.msra.mxu0 0.0
        %559 = vmatprep.subr.mxu0 0.0
        %560 = vmatpush1.msra.mxu0 0.0
        %561 = vmatprep.subr.mxu0 0.0
        %562 = vmatpush1.msra.mxu0 0.0
        %563 = vmatprep.subr.mxu0 0.0
        %564 = vmatpush1.msra.mxu0 0.0
        %565 = vmatprep.subr.mxu0 0.0
        %566 = vmatpush1.msra.mxu0 0.0
        %567 = vmatprep.subr.mxu0 0.0
        %568 = vmatpush1.msra.mxu0 0.0
        %569 = vmatprep.mubr.f32.mxu0 0.0
        %570 = vmatmul.mubr.f32.gmra.mrb[0].mxu0 %v500
        %v571 = vpop.f32.mrb[0].mxu0
        %v572 = vadd.f32 %v497, %v571
        %v573 = vpop.f32.mrb[0].mxu0
        %574 = vmatprep.mubr.f32.mxu0 0.0
        %575 = vmatmul.mubr.f32.gmra.mrb[0].mxu0 %v503
        %v576 = vpop.f32.mrb[0].mxu0
        %v577 = vadd.f32 %v497, %v576
        %v578 = vpop.f32.mrb[0].mxu0
        %579 = vdwg.mxu0
        %v580 = vmul.f32 %v572, 0.17677669
        %v581 = vmul.f32 %v577, 0.17677669
        %583 = vrot.lane.b32.xlu0 %v487, 120
        %v584 = vpop.permute.xlu0 %583
        %585 = vrot.lane.b32.xlu0 %v487, 112
        %v586 = vpop.permute.xlu0 %585
        %587 = vrot.lane.b32.xlu0 %v487, 104
        %v588 = vpop.permute.xlu0 %587
        %591 = vrot.lane.b32.xlu0 %v580, 120
        %v592 = vpop.permute.xlu0 %591
        %593 = vrot.lane.b32.xlu0 %v581, 120
        %v594 = vpop.permute.xlu0 %593
        %595 = vrot.lane.b32.xlu0 %v580, 112
        %v596 = vpop.permute.xlu0 %595
        %597 = vrot.lane.b32.xlu0 %v581, 112
        %v598 = vpop.permute.xlu0 %597
        %599 = vrot.lane.b32.xlu0 %v580, 104
        %v600 = vpop.permute.xlu0 %599
        %601 = vrot.lane.b32.xlu0 %v581, 104
        %v602 = vpop.permute.xlu0 %601
        %605 = vrot.lane.b32.xlu0 %v572, 120
        %v606 = vpop.permute.xlu0 %605
        %607 = vrot.lane.b32.xlu0 %v577, 120
        %v608 = vpop.permute.xlu0 %607
        %609 = vrot.lane.b32.xlu0 %v572, 112
        %v610 = vpop.permute.xlu0 %609
        %611 = vrot.lane.b32.xlu0 %v577, 112
        %v612 = vpop.permute.xlu0 %611
        %613 = vrot.lane.b32.xlu0 %v572, 104
        %v614 = vpop.permute.xlu0 %613
        %615 = vrot.lane.b32.xlu0 %v577, 104
        %v616 = vpop.permute.xlu0 %615
        %vm617 = vcmask 64512
        %v618 = vsel %vm617, %v487, 0
        %v620 = vsel %vm617, %v580, 0
        %v622 = vsel %vm617, %v581, 0
        %624 = vmatprep.subr.mxu0 0.0
        %625 = vmatpush1.xpose.msra.mxu0 %v620
        %626 = vmatprep.subr.mxu0 0.0
        %627 = vmatpush1.xpose.msra.mxu0 %v622
        %628 = vmatprep.subr.mxu0 0.0
        %629 = vmatpush1.xpose.msra.mxu0 0.0
        %630 = vmatprep.subr.mxu0 0.0
        %631 = vmatpush1.xpose.msra.mxu0 0.0
        %632 = vmatprep.subr.mxu0 0.0
        %633 = vmatpush1.xpose.msra.mxu0 0.0
        %634 = vmatprep.subr.mxu0 0.0
        %635 = vmatpush1.xpose.msra.mxu0 0.0
        %636 = vmatprep.subr.mxu0 0.0
        %637 = vmatpush1.xpose.msra.mxu0 0.0
        %638 = vmatprep.subr.mxu0 0.0
        %639 = vmatpush1.xpose.msra.mxu0 0.0
        %640 = vmatprep.subr.mxu0 0.0
        %641 = vmatpush1.xpose.msra.mxu0 0.0
        %642 = vmatprep.subr.mxu0 0.0
        %643 = vmatpush1.xpose.msra.mxu0 0.0
        %644 = vmatprep.subr.mxu0 0.0
        %645 = vmatpush1.xpose.msra.mxu0 0.0
        %646 = vmatprep.subr.mxu0 0.0
        %647 = vmatpush1.xpose.msra.mxu0 0.0
        %648 = vmatprep.subr.mxu0 0.0
        %649 = vmatpush1.xpose.msra.mxu0 0.0
        %650 = vmatprep.subr.mxu0 0.0
        %651 = vmatpush1.xpose.msra.mxu0 0.0
        %652 = vmatprep.subr.mxu0 0.0
        %653 = vmatpush1.xpose.msra.mxu0 0.0
        %654 = vmatprep.subr.mxu0 0.0
        %655 = vmatpush1.xpose.msra.mxu0 0.0
        %656 = vmatprep.subr.mxu0 0.0
        %657 = vmatpush1.xpose.msra.mxu0 0.0
        %658 = vmatprep.subr.mxu0 0.0
        %659 = vmatpush1.xpose.msra.mxu0 0.0
        %660 = vmatprep.subr.mxu0 0.0
        %661 = vmatpush1.xpose.msra.mxu0 0.0
        %662 = vmatprep.subr.mxu0 0.0
        %663 = vmatpush1.xpose.msra.mxu0 0.0
        %664 = vmatprep.subr.mxu0 0.0
        %665 = vmatpush1.xpose.msra.mxu0 0.0
        %666 = vmatprep.subr.mxu0 0.0
        %667 = vmatpush1.xpose.msra.mxu0 0.0
        %668 = vmatprep.subr.mxu0 0.0
        %669 = vmatpush1.xpose.msra.mxu0 0.0
        %670 = vmatprep.subr.mxu0 0.0
        %671 = vmatpush1.xpose.msra.mxu0 0.0
        %672 = vmatprep.subr.mxu0 0.0
        %673 = vmatpush1.xpose.msra.mxu0 0.0
        %674 = vmatprep.subr.mxu0 0.0
        %675 = vmatpush1.xpose.msra.mxu0 0.0
        %676 = vmatprep.subr.mxu0 0.0
        %677 = vmatpush1.xpose.msra.mxu0 0.0
        %678 = vmatprep.subr.mxu0 0.0
        %679 = vmatpush1.xpose.msra.mxu0 0.0
        %680 = vmatprep.subr.mxu0 0.0
        %681 = vmatpush1.xpose.msra.mxu0 0.0
        %682 = vmatprep.subr.mxu0 0.0
        %683 = vmatpush1.xpose.msra.mxu0 0.0
        %684 = vmatprep.subr.mxu0 0.0
        %685 = vmatpush1.xpose.msra.mxu0 0.0
        %686 = vmatprep.subr.mxu0 0.0
        %687 = vmatpush1.xpose.msra.mxu0 0.0
        %688 = vmatprep.mubr.f32.mxu0 0.0
        %689 = vmatmul.mubr.f32.gmra.mrb[0].mxu0 %v618
        %v690 = vpop.f32.mrb[0].mxu0
        %v691 = vadd.f32 0.0, %v690
        %v692 = vpop.f32.mrb[0].mxu0
        %693 = vdwg.mxu0
        %v694 = vsel %vm617, %v584, 0
        %v696 = vsel %vm617, %v592, 0
        %v698 = vsel %vm617, %v594, 0
        %700 = vmatprep.subr.mxu0 0.0
        %701 = vmatpush1.xpose.msra.mxu0 %v696
        %702 = vmatprep.subr.mxu0 0.0
        %703 = vmatpush1.xpose.msra.mxu0 %v698
        %704 = vmatprep.subr.mxu0 0.0
        %705 = vmatpush1.xpose.msra.mxu0 0.0
        %706 = vmatprep.subr.mxu0 0.0
        %707 = vmatpush1.xpose.msra.mxu0 0.0
        %708 = vmatprep.subr.mxu0 0.0
        %709 = vmatpush1.xpose.msra.mxu0 0.0
        %710 = vmatprep.subr.mxu0 0.0
        %711 = vmatpush1.xpose.msra.mxu0 0.0
        %712 = vmatprep.subr.mxu0 0.0
        %713 = vmatpush1.xpose.msra.mxu0 0.0
        %714 = vmatprep.subr.mxu0 0.0
        %715 = vmatpush1.xpose.msra.mxu0 0.0
        %716 = vmatprep.subr.mxu0 0.0
        %717 = vmatpush1.xpose.msra.mxu0 0.0
        %718 = vmatprep.subr.mxu0 0.0
        %719 = vmatpush1.xpose.msra.mxu0 0.0
        %720 = vmatprep.subr.mxu0 0.0
        %721 = vmatpush1.xpose.msra.mxu0 0.0
        %722 = vmatprep.subr.mxu0 0.0
        %723 = vmatpush1.xpose.msra.mxu0 0.0
        %724 = vmatprep.subr.mxu0 0.0
        %725 = vmatpush1.xpose.msra.mxu0 0.0
        %726 = vmatprep.subr.mxu0 0.0
        %727 = vmatpush1.xpose.msra.mxu0 0.0
        %728 = vmatprep.subr.mxu0 0.0
        %729 = vmatpush1.xpose.msra.mxu0 0.0
        %730 = vmatprep.subr.mxu0 0.0
        %731 = vmatpush1.xpose.msra.mxu0 0.0
        %732 = vmatprep.subr.mxu0 0.0
        %733 = vmatpush1.xpose.msra.mxu0 0.0
        %734 = vmatprep.subr.mxu0 0.0
        %735 = vmatpush1.xpose.msra.mxu0 0.0
        %736 = vmatprep.subr.mxu0 0.0
        %737 = vmatpush1.xpose.msra.mxu0 0.0
        %738 = vmatprep.subr.mxu0 0.0
        %739 = vmatpush1.xpose.msra.mxu0 0.0
        %740 = vmatprep.subr.mxu0 0.0
        %741 = vmatpush1.xpose.msra.mxu0 0.0
        %742 = vmatprep.subr.mxu0 0.0
        %743 = vmatpush1.xpose.msra.mxu0 0.0
        %744 = vmatprep.subr.mxu0 0.0
        %745 = vmatpush1.xpose.msra.mxu0 0.0
        %746 = vmatprep.subr.mxu0 0.0
        %747 = vmatpush1.xpose.msra.mxu0 0.0
        %748 = vmatprep.subr.mxu0 0.0
        %749 = vmatpush1.xpose.msra.mxu0 0.0
        %750 = vmatprep.subr.mxu0 0.0
        %751 = vmatpush1.xpose.msra.mxu0 0.0
        %752 = vmatprep.subr.mxu0 0.0
        %753 = vmatpush1.xpose.msra.mxu0 0.0
        %754 = vmatprep.subr.mxu0 0.0
        %755 = vmatpush1.xpose.msra.mxu0 0.0
        %756 = vmatprep.subr.mxu0 0.0
        %757 = vmatpush1.xpose.msra.mxu0 0.0
        %758 = vmatprep.subr.mxu0 0.0
        %759 = vmatpush1.xpose.msra.mxu0 0.0
        %760 = vmatprep.subr.mxu0 0.0
        %761 = vmatpush1.xpose.msra.mxu0 0.0
        %762 = vmatprep.subr.mxu0 0.0
        %763 = vmatpush1.xpose.msra.mxu0 0.0
        %764 = vmatprep.mubr.f32.mxu0 0.0
        %765 = vmatmul.mubr.f32.gmra.mrb[0].mxu0 %v694
        %v766 = vpop.f32.mrb[0].mxu0
        %v767 = vadd.f32 0.0, %v766
        %v768 = vpop.f32.mrb[0].mxu0
        %769 = vdwg.mxu0
        %v770 = vsel %vm617, %v586, 0
        %v772 = vsel %vm617, %v596, 0
        %v774 = vsel %vm617, %v598, 0
        %776 = vmatprep.subr.mxu0 0.0
        %777 = vmatpush1.xpose.msra.mxu0 %v772
        %778 = vmatprep.subr.mxu0 0.0
        %779 = vmatpush1.xpose.msra.mxu0 %v774
        %780 = vmatprep.subr.mxu0 0.0
        %781 = vmatpush1.xpose.msra.mxu0 0.0
        %782 = vmatprep.subr.mxu0 0.0
        %783 = vmatpush1.xpose.msra.mxu0 0.0
        %784 = vmatprep.subr.mxu0 0.0
        %785 = vmatpush1.xpose.msra.mxu0 0.0
        %786 = vmatprep.subr.mxu0 0.0
        %787 = vmatpush1.xpose.msra.mxu0 0.0
        %788 = vmatprep.subr.mxu0 0.0
        %789 = vmatpush1.xpose.msra.mxu0 0.0
        %790 = vmatprep.subr.mxu0 0.0
        %791 = vmatpush1.xpose.msra.mxu0 0.0
        %792 = vmatprep.subr.mxu0 0.0
        %793 = vmatpush1.xpose.msra.mxu0 0.0
        %794 = vmatprep.subr.mxu0 0.0
        %795 = vmatpush1.xpose.msra.mxu0 0.0
        %796 = vmatprep.subr.mxu0 0.0
        %797 = vmatpush1.xpose.msra.mxu0 0.0
        %798 = vmatprep.subr.mxu0 0.0
        %799 = vmatpush1.xpose.msra.mxu0 0.0
        %800 = vmatprep.subr.mxu0 0.0
        %801 = vmatpush1.xpose.msra.mxu0 0.0
        %802 = vmatprep.subr.mxu0 0.0
        %803 = vmatpush1.xpose.msra.mxu0 0.0
        %804 = vmatprep.subr.mxu0 0.0
        %805 = vmatpush1.xpose.msra.mxu0 0.0
        %806 = vmatprep.subr.mxu0 0.0
        %807 = vmatpush1.xpose.msra.mxu0 0.0
        %808 = vmatprep.subr.mxu0 0.0
        %809 = vmatpush1.xpose.msra.mxu0 0.0
        %810 = vmatprep.subr.mxu0 0.0
        %811 = vmatpush1.xpose.msra.mxu0 0.0
        %812 = vmatprep.subr.mxu0 0.0
        %813 = vmatpush1.xpose.msra.mxu0 0.0
        %814 = vmatprep.subr.mxu0 0.0
        %815 = vmatpush1.xpose.msra.mxu0 0.0
        %816 = vmatprep.subr.mxu0 0.0
        %817 = vmatpush1.xpose.msra.mxu0 0.0
        %818 = vmatprep.subr.mxu0 0.0
        %819 = vmatpush1.xpose.msra.mxu0 0.0
        %820 = vmatprep.subr.mxu0 0.0
        %821 = vmatpush1.xpose.msra.mxu0 0.0
        %822 = vmatprep.subr.mxu0 0.0
        %823 = vmatpush1.xpose.msra.mxu0 0.0
        %824 = vmatprep.subr.mxu0 0.0
        %825 = vmatpush1.xpose.msra.mxu0 0.0
        %826 = vmatprep.subr.mxu0 0.0
        %827 = vmatpush1.xpose.msra.mxu0 0.0
        %828 = vmatprep.subr.mxu0 0.0
        %829 = vmatpush1.xpose.msra.mxu0 0.0
        %830 = vmatprep.subr.mxu0 0.0
        %831 = vmatpush1.xpose.msra.mxu0 0.0
        %832 = vmatprep.subr.mxu0 0.0
        %833 = vmatpush1.xpose.msra.mxu0 0.0
        %834 = vmatprep.subr.mxu0 0.0
        %835 = vmatpush1.xpose.msra.mxu0 0.0
        %836 = vmatprep.subr.mxu0 0.0
        %837 = vmatpush1.xpose.msra.mxu0 0.0
        %838 = vmatprep.subr.mxu0 0.0
        %839 = vmatpush1.xpose.msra.mxu0 0.0
        %840 = vmatprep.mubr.f32.mxu0 0.0
        %841 = vmatmul.mubr.f32.gmra.mrb[0].mxu0 %v770
        %v842 = vpop.f32.mrb[0].mxu0
        %v843 = vadd.f32 0.0, %v842
        %v844 = vpop.f32.mrb[0].mxu0
        %845 = vdwg.mxu0
        %v846 = vsel %vm617, %v588, 0
        %v848 = vsel %vm617, %v600, 0
        %v850 = vsel %vm617, %v602, 0
        %852 = vmatprep.subr.mxu0 0.0
        %853 = vmatpush1.xpose.msra.mxu0 %v848
        %854 = vmatprep.subr.mxu0 0.0
        %855 = vmatpush1.xpose.msra.mxu0 %v850
        %856 = vmatprep.subr.mxu0 0.0
        %857 = vmatpush1.xpose.msra.mxu0 0.0
        %858 = vmatprep.subr.mxu0 0.0
        %859 = vmatpush1.xpose.msra.mxu0 0.0
        %860 = vmatprep.subr.mxu0 0.0
        %861 = vmatpush1.xpose.msra.mxu0 0.0
        %862 = vmatprep.subr.mxu0 0.0
        %863 = vmatpush1.xpose.msra.mxu0 0.0
        %864 = vmatprep.subr.mxu0 0.0
        %865 = vmatpush1.xpose.msra.mxu0 0.0
        %866 = vmatprep.subr.mxu0 0.0
        %867 = vmatpush1.xpose.msra.mxu0 0.0
        %868 = vmatprep.subr.mxu0 0.0
        %869 = vmatpush1.xpose.msra.mxu0 0.0
        %870 = vmatprep.subr.mxu0 0.0
        %871 = vmatpush1.xpose.msra.mxu0 0.0
        %872 = vmatprep.subr.mxu0 0.0
        %873 = vmatpush1.xpose.msra.mxu0 0.0
        %874 = vmatprep.subr.mxu0 0.0
        %875 = vmatpush1.xpose.msra.mxu0 0.0
        %876 = vmatprep.subr.mxu0 0.0
        %877 = vmatpush1.xpose.msra.mxu0 0.0
        %878 = vmatprep.subr.mxu0 0.0
        %879 = vmatpush1.xpose.msra.mxu0 0.0
        %880 = vmatprep.subr.mxu0 0.0
        %881 = vmatpush1.xpose.msra.mxu0 0.0
        %882 = vmatprep.subr.mxu0 0.0
        %883 = vmatpush1.xpose.msra.mxu0 0.0
        %884 = vmatprep.subr.mxu0 0.0
        %885 = vmatpush1.xpose.msra.mxu0 0.0
        %886 = vmatprep.subr.mxu0 0.0
        %887 = vmatpush1.xpose.msra.mxu0 0.0
        %888 = vmatprep.subr.mxu0 0.0
        %889 = vmatpush1.xpose.msra.mxu0 0.0
        %890 = vmatprep.subr.mxu0 0.0
        %891 = vmatpush1.xpose.msra.mxu0 0.0
        %892 = vmatprep.subr.mxu0 0.0
        %893 = vmatpush1.xpose.msra.mxu0 0.0
        %894 = vmatprep.subr.mxu0 0.0
        %895 = vmatpush1.xpose.msra.mxu0 0.0
        %896 = vmatprep.subr.mxu0 0.0
        %897 = vmatpush1.xpose.msra.mxu0 0.0
        %898 = vmatprep.subr.mxu0 0.0
        %899 = vmatpush1.xpose.msra.mxu0 0.0
        %900 = vmatprep.subr.mxu0 0.0
        %901 = vmatpush1.xpose.msra.mxu0 0.0
        %902 = vmatprep.subr.mxu0 0.0
        %903 = vmatpush1.xpose.msra.mxu0 0.0
        %904 = vmatprep.subr.mxu0 0.0
        %905 = vmatpush1.xpose.msra.mxu0 0.0
        %906 = vmatprep.subr.mxu0 0.0
        %907 = vmatpush1.xpose.msra.mxu0 0.0
        %908 = vmatprep.subr.mxu0 0.0
        %909 = vmatpush1.xpose.msra.mxu0 0.0
        %910 = vmatprep.subr.mxu0 0.0
        %911 = vmatpush1.xpose.msra.mxu0 0.0
        %912 = vmatprep.subr.mxu0 0.0
        %913 = vmatpush1.xpose.msra.mxu0 0.0
        %914 = vmatprep.subr.mxu0 0.0
        %915 = vmatpush1.xpose.msra.mxu0 0.0
        %916 = vmatprep.mubr.f32.mxu0 0.0
        %917 = vmatmul.mubr.f32.gmra.mrb[0].mxu0 %v846
        %v918 = vpop.f32.mrb[0].mxu0
        %v919 = vadd.f32 0.0, %v918
        %v920 = vpop.f32.mrb[0].mxu0
        %921 = vdwg.mxu0
        %v922 = vsel %vm416, %v691, -inf
        %923 = vmax.xlane.f32.xlu0 %v922
        %v924 = vpop.xlane.xlu0 %923
        %v925 = vsel %vm416, %v767, -inf
        %926 = vmax.xlane.f32.xlu0 %v925
        %v927 = vpop.xlane.xlu0 %926
        %v928 = vsel %vm416, %v843, -inf
        %929 = vmax.xlane.f32.xlu0 %v928
        %v930 = vpop.xlane.xlu0 %929
        %v931 = vsel %vm416, %v919, -inf
        %932 = vmax.xlane.f32.xlu0 %v931
        %v933 = vpop.xlane.xlu0 %932
        %v934 = vsub.f32 %v691, %v924
        %v935 = vsub.f32 %v767, %v927
        %v936 = vsub.f32 %v843, %v930
        %v937 = vsub.f32 %v919, %v933
        %v938 = vmul.f32 %v934, 1.442695
        %v939 = vpow.pop %v938
        %v940 = vmul.f32 %v935, 1.442695
        %v941 = vpow.pop %v940
        %v942 = vmul.f32 %v936, 1.442695
        %v943 = vpow.pop %v942
        %v944 = vmul.f32 %v937, 1.442695
        %v945 = vpow.pop %v944
        %v946 = vsel %vm416, %v939, 0.0
        %947 = vadd.xlane.f32.xlu0 %v946
        %v948 = vpop.xlane.xlu0 %947
        %v949 = vsel %vm416, %v941, 0.0
        %950 = vadd.xlane.f32.xlu0 %v949
        %v951 = vpop.xlane.xlu0 %950
        %v952 = vsel %vm416, %v943, 0.0
        %953 = vadd.xlane.f32.xlu0 %v952
        %v954 = vpop.xlane.xlu0 %953
        %v955 = vsel %vm416, %v945, 0.0
        %956 = vadd.xlane.f32.xlu0 %v955
        %v957 = vpop.xlane.xlu0 %956
        %v958 = vrcp.pop %v948
        %v959 = vrcp.pop %v951
        %v960 = vrcp.pop %v954
        %v961 = vrcp.pop %v957
        %v962 = vmul.f32 %v939, %v958
        %v963 = vmul.f32 %v941, %v959
        %v964 = vmul.f32 %v943, %v960
        %v965 = vmul.f32 %v945, %v961
        %966 = vrot.lane.b32.xlu0 %v572, 96
        %v967 = vpop.permute.xlu0 %966
        %968 = vrot.lane.b32.xlu0 %v577, 96
        %v969 = vpop.permute.xlu0 %968
        %v973 = vsel %vm416, %v962, 0
        %975 = vmatprep.subr.mxu0 0.0
        %976 = vmatpush1.msra.mxu0 %v967
        %977 = vmatprep.subr.mxu0 0.0
        %978 = vmatpush1.msra.mxu0 %v969
        %979 = vmatprep.subr.mxu0 0.0
        %980 = vmatpush1.msra.mxu0 0.0
        %981 = vmatprep.subr.mxu0 0.0
        %982 = vmatpush1.msra.mxu0 0.0
        %983 = vmatprep.subr.mxu0 0.0
        %984 = vmatpush1.msra.mxu0 0.0
        %985 = vmatprep.subr.mxu0 0.0
        %986 = vmatpush1.msra.mxu0 0.0
        %987 = vmatprep.subr.mxu0 0.0
        %988 = vmatpush1.msra.mxu0 0.0
        %989 = vmatprep.subr.mxu0 0.0
        %990 = vmatpush1.msra.mxu0 0.0
        %991 = vmatprep.subr.mxu0 0.0
        %992 = vmatpush1.msra.mxu0 0.0
        %993 = vmatprep.subr.mxu0 0.0
        %994 = vmatpush1.msra.mxu0 0.0
        %995 = vmatprep.subr.mxu0 0.0
        %996 = vmatpush1.msra.mxu0 0.0
        %997 = vmatprep.subr.mxu0 0.0
        %998 = vmatpush1.msra.mxu0 0.0
        %999 = vmatprep.subr.mxu0 0.0
        %1000 = vmatpush1.msra.mxu0 0.0
        %1001 = vmatprep.subr.mxu0 0.0
        %1002 = vmatpush1.msra.mxu0 0.0
        %1003 = vmatprep.subr.mxu0 0.0
        %1004 = vmatpush1.msra.mxu0 0.0
        %1005 = vmatprep.subr.mxu0 0.0
        %1006 = vmatpush1.msra.mxu0 0.0
        %1007 = vmatprep.subr.mxu0 0.0
        %1008 = vmatpush1.msra.mxu0 0.0
        %1009 = vmatprep.subr.mxu0 0.0
        %1010 = vmatpush1.msra.mxu0 0.0
        %1011 = vmatprep.subr.mxu0 0.0
        %1012 = vmatpush1.msra.mxu0 0.0
        %1013 = vmatprep.subr.mxu0 0.0
        %1014 = vmatpush1.msra.mxu0 0.0
        %1015 = vmatprep.subr.mxu0 0.0
        %1016 = vmatpush1.msra.mxu0 0.0
        %1017 = vmatprep.subr.mxu0 0.0
        %1018 = vmatpush1.msra.mxu0 0.0
        %1019 = vmatprep.subr.mxu0 0.0
        %1020 = vmatpush1.msra.mxu0 0.0
        %1021 = vmatprep.subr.mxu0 0.0
        %1022 = vmatpush1.msra.mxu0 0.0
        %1023 = vmatprep.subr.mxu0 0.0
        %1024 = vmatpush1.msra.mxu0 0.0
        %1025 = vmatprep.subr.mxu0 0.0
        %1026 = vmatpush1.msra.mxu0 0.0
        %1027 = vmatprep.subr.mxu0 0.0
        %1028 = vmatpush1.msra.mxu0 0.0
        %1029 = vmatprep.subr.mxu0 0.0
        %1030 = vmatpush1.msra.mxu0 0.0
        %1031 = vmatprep.subr.mxu0 0.0
        %1032 = vmatpush1.msra.mxu0 0.0
        %1033 = vmatprep.subr.mxu0 0.0
        %1034 = vmatpush1.msra.mxu0 0.0
        %1035 = vmatprep.subr.mxu0 0.0
        %1036 = vmatpush1.msra.mxu0 0.0
        %1037 = vmatprep.subr.mxu0 0.0
        %1038 = vmatpush1.msra.mxu0 0.0
        %1039 = vmatprep.mubr.f32.mxu0 0.0
        %1040 = vmatmul.mubr.f32.gmra.mrb[0].mxu0 %v973
        %v1041 = vpop.f32.mrb[0].mxu0
        %v1042 = vadd.f32 0.0, %v1041
        %v1043 = vpop.f32.mrb[0].mxu0
        %1044 = vdwg.mxu0
        %1045 = vrot.lane.b32.xlu0 %v606, 96
        %v1046 = vpop.permute.xlu0 %1045
        %1047 = vrot.lane.b32.xlu0 %v608, 96
        %v1048 = vpop.permute.xlu0 %1047
        %v1052 = vsel %vm416, %v963, 0
        %1054 = vmatprep.subr.mxu0 0.0
        %1055 = vmatpush1.msra.mxu0 %v1046
        %1056 = vmatprep.subr.mxu0 0.0
        %1057 = vmatpush1.msra.mxu0 %v1048
        %1058 = vmatprep.subr.mxu0 0.0
        %1059 = vmatpush1.msra.mxu0 0.0
        %1060 = vmatprep.subr.mxu0 0.0
        %1061 = vmatpush1.msra.mxu0 0.0
        %1062 = vmatprep.subr.mxu0 0.0
        %1063 = vmatpush1.msra.mxu0 0.0
        %1064 = vmatprep.subr.mxu0 0.0
        %1065 = vmatpush1.msra.mxu0 0.0
        %1066 = vmatprep.subr.mxu0 0.0
        %1067 = vmatpush1.msra.mxu0 0.0
        %1068 = vmatprep.subr.mxu0 0.0
        %1069 = vmatpush1.msra.mxu0 0.0
        %1070 = vmatprep.subr.mxu0 0.0
        %1071 = vmatpush1.msra.mxu0 0.0
        %1072 = vmatprep.subr.mxu0 0.0
        %1073 = vmatpush1.msra.mxu0 0.0
        %1074 = vmatprep.subr.mxu0 0.0
        %1075 = vmatpush1.msra.mxu0 0.0
        %1076 = vmatprep.subr.mxu0 0.0
        %1077 = vmatpush1.msra.mxu0 0.0
        %1078 = vmatprep.subr.mxu0 0.0
        %1079 = vmatpush1.msra.mxu0 0.0
        %1080 = vmatprep.subr.mxu0 0.0
        %1081 = vmatpush1.msra.mxu0 0.0
        %1082 = vmatprep.subr.mxu0 0.0
        %1083 = vmatpush1.msra.mxu0 0.0
        %1084 = vmatprep.subr.mxu0 0.0
        %1085 = vmatpush1.msra.mxu0 0.0
        %1086 = vmatprep.subr.mxu0 0.0
        %1087 = vmatpush1.msra.mxu0 0.0
        %1088 = vmatprep.subr.mxu0 0.0
        %1089 = vmatpush1.msra.mxu0 0.0
        %1090 = vmatprep.subr.mxu0 0.0
        %1091 = vmatpush1.msra.mxu0 0.0
        %1092 = vmatprep.subr.mxu0 0.0
        %1093 = vmatpush1.msra.mxu0 0.0
        %1094 = vmatprep.subr.mxu0 0.0
        %1095 = vmatpush1.msra.mxu0 0.0
        %1096 = vmatprep.subr.mxu0 0.0
        %1097 = vmatpush1.msra.mxu0 0.0
        %1098 = vmatprep.subr.mxu0 0.0
        %1099 = vmatpush1.msra.mxu0 0.0
        %1100 = vmatprep.subr.mxu0 0.0
        %1101 = vmatpush1.msra.mxu0 0.0
        %1102 = vmatprep.subr.mxu0 0.0
        %1103 = vmatpush1.msra.mxu0 0.0
        %1104 = vmatprep.subr.mxu0 0.0
        %1105 = vmatpush1.msra.mxu0 0.0
        %1106 = vmatprep.subr.mxu0 0.0
        %1107 = vmatpush1.msra.mxu0 0.0
        %1108 = vmatprep.subr.mxu0 0.0
        %1109 = vmatpush1.msra.mxu0 0.0
        %1110 = vmatprep.subr.mxu0 0.0
        %1111 = vmatpush1.msra.mxu0 0.0
        %1112 = vmatprep.subr.mxu0 0.0
        %1113 = vmatpush1.msra.mxu0 0.0
        %1114 = vmatprep.subr.mxu0 0.0
        %1115 = vmatpush1.msra.mxu0 0.0
        %1116 = vmatprep.subr.mxu0 0.0
        %1117 = vmatpush1.msra.mxu0 0.0
        %1118 = vmatprep.mubr.f32.mxu0 0.0
        %1119 = vmatmul.mubr.f32.gmra.mrb[0].mxu0 %v1052
        %v1120 = vpop.f32.mrb[0].mxu0
        %v1121 = vadd.f32 0.0, %v1120
        %v1122 = vpop.f32.mrb[0].mxu0
        %1123 = vdwg.mxu0
        %1124 = vrot.lane.b32.xlu0 %v610, 96
        %v1125 = vpop.permute.xlu0 %1124
        %1126 = vrot.lane.b32.xlu0 %v612, 96
        %v1127 = vpop.permute.xlu0 %1126
        %v1131 = vsel %vm416, %v964, 0
        %1133 = vmatprep.subr.mxu0 0.0
        %1134 = vmatpush1.msra.mxu0 %v1125
        %1135 = vmatprep.subr.mxu0 0.0
        %1136 = vmatpush1.msra.mxu0 %v1127
        %1137 = vmatprep.subr.mxu0 0.0
        %1138 = vmatpush1.msra.mxu0 0.0
        %1139 = vmatprep.subr.mxu0 0.0
        %1140 = vmatpush1.msra.mxu0 0.0
        %1141 = vmatprep.subr.mxu0 0.0
        %1142 = vmatpush1.msra.mxu0 0.0
        %1143 = vmatprep.subr.mxu0 0.0
        %1144 = vmatpush1.msra.mxu0 0.0
        %1145 = vmatprep.subr.mxu0 0.0
        %1146 = vmatpush1.msra.mxu0 0.0
        %1147 = vmatprep.subr.mxu0 0.0
        %1148 = vmatpush1.msra.mxu0 0.0
        %1149 = vmatprep.subr.mxu0 0.0
        %1150 = vmatpush1.msra.mxu0 0.0
        %1151 = vmatprep.subr.mxu0 0.0
        %1152 = vmatpush1.msra.mxu0 0.0
        %1153 = vmatprep.subr.mxu0 0.0
        %1154 = vmatpush1.msra.mxu0 0.0
        %1155 = vmatprep.subr.mxu0 0.0
        %1156 = vmatpush1.msra.mxu0 0.0
        %1157 = vmatprep.subr.mxu0 0.0
        %1158 = vmatpush1.msra.mxu0 0.0
        %1159 = vmatprep.subr.mxu0 0.0
        %1160 = vmatpush1.msra.mxu0 0.0
        %1161 = vmatprep.subr.mxu0 0.0
        %1162 = vmatpush1.msra.mxu0 0.0
        %1163 = vmatprep.subr.mxu0 0.0
        %1164 = vmatpush1.msra.mxu0 0.0
        %1165 = vmatprep.subr.mxu0 0.0
        %1166 = vmatpush1.msra.mxu0 0.0
        %1167 = vmatprep.subr.mxu0 0.0
        %1168 = vmatpush1.msra.mxu0 0.0
        %1169 = vmatprep.subr.mxu0 0.0
        %1170 = vmatpush1.msra.mxu0 0.0
        %1171 = vmatprep.subr.mxu0 0.0
        %1172 = vmatpush1.msra.mxu0 0.0
        %1173 = vmatprep.subr.mxu0 0.0
        %1174 = vmatpush1.msra.mxu0 0.0
        %1175 = vmatprep.subr.mxu0 0.0
        %1176 = vmatpush1.msra.mxu0 0.0
        %1177 = vmatprep.subr.mxu0 0.0
        %1178 = vmatpush1.msra.mxu0 0.0
        %1179 = vmatprep.subr.mxu0 0.0
        %1180 = vmatpush1.msra.mxu0 0.0
        %1181 = vmatprep.subr.mxu0 0.0
        %1182 = vmatpush1.msra.mxu0 0.0
        %1183 = vmatprep.subr.mxu0 0.0
        %1184 = vmatpush1.msra.mxu0 0.0
        %1185 = vmatprep.subr.mxu0 0.0
        %1186 = vmatpush1.msra.mxu0 0.0
        %1187 = vmatprep.subr.mxu0 0.0
        %1188 = vmatpush1.msra.mxu0 0.0
        %1189 = vmatprep.subr.mxu0 0.0
        %1190 = vmatpush1.msra.mxu0 0.0
        %1191 = vmatprep.subr.mxu0 0.0
        %1192 = vmatpush1.msra.mxu0 0.0
        %1193 = vmatprep.subr.mxu0 0.0
        %1194 = vmatpush1.msra.mxu0 0.0
        %1195 = vmatprep.subr.mxu0 0.0
        %1196 = vmatpush1.msra.mxu0 0.0
        %1197 = vmatprep.mubr.f32.mxu0 0.0
        %1198 = vmatmul.mubr.f32.gmra.mrb[0].mxu0 %v1131
        %v1199 = vpop.f32.mrb[0].mxu0
        %v1200 = vadd.f32 0.0, %v1199
        %v1201 = vpop.f32.mrb[0].mxu0
        %1202 = vdwg.mxu0
        %1203 = vrot.lane.b32.xlu0 %v614, 96
        %v1204 = vpop.permute.xlu0 %1203
        %1205 = vrot.lane.b32.xlu0 %v616, 96
        %v1206 = vpop.permute.xlu0 %1205
        %v1210 = vsel %vm416, %v965, 0
        %1212 = vmatprep.subr.mxu0 0.0
        %1213 = vmatpush1.msra.mxu0 %v1204
        %1214 = vmatprep.subr.mxu0 0.0
        %1215 = vmatpush1.msra.mxu0 %v1206
        %1216 = vmatprep.subr.mxu0 0.0
        %1217 = vmatpush1.msra.mxu0 0.0
        %1218 = vmatprep.subr.mxu0 0.0
        %1219 = vmatpush1.msra.mxu0 0.0
        %1220 = vmatprep.subr.mxu0 0.0
        %1221 = vmatpush1.msra.mxu0 0.0
        %1222 = vmatprep.subr.mxu0 0.0
        %1223 = vmatpush1.msra.mxu0 0.0
        %1224 = vmatprep.subr.mxu0 0.0
        %1225 = vmatpush1.msra.mxu0 0.0
        %1226 = vmatprep.subr.mxu0 0.0
        %1227 = vmatpush1.msra.mxu0 0.0
        %1228 = vmatprep.subr.mxu0 0.0
        %1229 = vmatpush1.msra.mxu0 0.0
        %1230 = vmatprep.subr.mxu0 0.0
        %1231 = vmatpush1.msra.mxu0 0.0
        %1232 = vmatprep.subr.mxu0 0.0
        %1233 = vmatpush1.msra.mxu0 0.0
        %1234 = vmatprep.subr.mxu0 0.0
        %1235 = vmatpush1.msra.mxu0 0.0
        %1236 = vmatprep.subr.mxu0 0.0
        %1237 = vmatpush1.msra.mxu0 0.0
        %1238 = vmatprep.subr.mxu0 0.0
        %1239 = vmatpush1.msra.mxu0 0.0
        %1240 = vmatprep.subr.mxu0 0.0
        %1241 = vmatpush1.msra.mxu0 0.0
        %1242 = vmatprep.subr.mxu0 0.0
        %1243 = vmatpush1.msra.mxu0 0.0
        %1244 = vmatprep.subr.mxu0 0.0
        %1245 = vmatpush1.msra.mxu0 0.0
        %1246 = vmatprep.subr.mxu0 0.0
        %1247 = vmatpush1.msra.mxu0 0.0
        %1248 = vmatprep.subr.mxu0 0.0
        %1249 = vmatpush1.msra.mxu0 0.0
        %1250 = vmatprep.subr.mxu0 0.0
        %1251 = vmatpush1.msra.mxu0 0.0
        %1252 = vmatprep.subr.mxu0 0.0
        %1253 = vmatpush1.msra.mxu0 0.0
        %1254 = vmatprep.subr.mxu0 0.0
        %1255 = vmatpush1.msra.mxu0 0.0
        %1256 = vmatprep.subr.mxu0 0.0
        %1257 = vmatpush1.msra.mxu0 0.0
        %1258 = vmatprep.subr.mxu0 0.0
        %1259 = vmatpush1.msra.mxu0 0.0
        %1260 = vmatprep.subr.mxu0 0.0
        %1261 = vmatpush1.msra.mxu0 0.0
        %1262 = vmatprep.subr.mxu0 0.0
        %1263 = vmatpush1.msra.mxu0 0.0
        %1264 = vmatprep.subr.mxu0 0.0
        %1265 = vmatpush1.msra.mxu0 0.0
        %1266 = vmatprep.subr.mxu0 0.0
        %1267 = vmatpush1.msra.mxu0 0.0
        %1268 = vmatprep.subr.mxu0 0.0
        %1269 = vmatpush1.msra.mxu0 0.0
        %1270 = vmatprep.subr.mxu0 0.0
        %1271 = vmatpush1.msra.mxu0 0.0
        %1272 = vmatprep.subr.mxu0 0.0
        %1273 = vmatpush1.msra.mxu0 0.0
        %1274 = vmatprep.subr.mxu0 0.0
        %1275 = vmatpush1.msra.mxu0 0.0
        %1276 = vmatprep.mubr.f32.mxu0 0.0
        %1277 = vmatmul.mubr.f32.gmra.mrb[0].mxu0 %v1210
        %v1278 = vpop.f32.mrb[0].mxu0
        %v1279 = vadd.f32 0.0, %v1278
        %v1280 = vpop.f32.mrb[0].mxu0
        %1281 = vdwg.mxu0
        %1283 = vrot.lane.b32.xlu0 %v1121, 8
        %v1284 = vpop.permute.xlu0 %1283
        %1287 = vrot.lane.b32.xlu0 %v1200, 16
        %v1288 = vpop.permute.xlu0 %1287
        %1291 = vrot.lane.b32.xlu0 %v1279, 24
        %v1292 = vpop.permute.xlu0 %1291
        %v1294 = vsel %vm617, %v1042, %v1284
        %v1295 = vsel %vm416, %v1294, %v1288
        %vm1296 = vcmask 195584
        %v1297 = vsel %vm1296, %v1295, %v1292
        %v1298 = vadd.f32 %v487, %v1297
        %v1299 = vld [vmem:[#allocation10] sm:$0xff]
        %v1300 = vld [vmem:[#allocation10 + $0x8] sm:$0xff]
        %v1301 = vld [vmem:[#allocation10 + $0x10] sm:$0xff]
        %v1302 = vld [vmem:[#allocation10 + $0x18] sm:$0xff]
        %v1303 = vld [vmem:[%s7] sm:$0x1]
        %v1305 = vlaneseq
        %v1306 = vshrl.u32 %v1305, 7
        %v1307 = vsub.s32 0, %v1306
        %v1308 = vrot.slane %v1303, %v1307
        %vm1310 = vcmask 261120
        %v1312 = vsel %vm1310, %v1298, 0
        %1314 = vmatprep.subr.mxu0 0.0
        %1315 = vmatpush1.msra.mxu0 %v1299
        %1316 = vmatprep.subr.mxu0 0.0
        %1317 = vmatpush1.msra.mxu0 %v1300
        %1318 = vmatprep.subr.mxu0 0.0
        %1319 = vmatpush1.msra.mxu0 %v1301
        %1320 = vmatprep.subr.mxu0 0.0
        %1321 = vmatpush1.msra.mxu0 %v1302
        %1322 = vmatprep.subr.mxu0 0.0
        %1323 = vmatpush1.msra.mxu0 0.0
        %1324 = vmatprep.subr.mxu0 0.0
        %1325 = vmatpush1.msra.mxu0 0.0
        %1326 = vmatprep.subr.mxu0 0.0
        %1327 = vmatpush1.msra.mxu0 0.0
        %1328 = vmatprep.subr.mxu0 0.0
        %1329 = vmatpush1.msra.mxu0 0.0
        %1330 = vmatprep.subr.mxu0 0.0
        %1331 = vmatpush1.msra.mxu0 0.0
        %1332 = vmatprep.subr.mxu0 0.0
        %1333 = vmatpush1.msra.mxu0 0.0
        %1334 = vmatprep.subr.mxu0 0.0
        %1335 = vmatpush1.msra.mxu0 0.0
        %1336 = vmatprep.subr.mxu0 0.0
        %1337 = vmatpush1.msra.mxu0 0.0
        %1338 = vmatprep.subr.mxu0 0.0
        %1339 = vmatpush1.msra.mxu0 0.0
        %1340 = vmatprep.subr.mxu0 0.0
        %1341 = vmatpush1.msra.mxu0 0.0
        %1342 = vmatprep.subr.mxu0 0.0
        %1343 = vmatpush1.msra.mxu0 0.0
        %1344 = vmatprep.subr.mxu0 0.0
        %1345 = vmatpush1.msra.mxu0 0.0
        %1346 = vmatprep.subr.mxu0 0.0
        %1347 = vmatpush1.msra.mxu0 0.0
        %1348 = vmatprep.subr.mxu0 0.0
        %1349 = vmatpush1.msra.mxu0 0.0
        %1350 = vmatprep.subr.mxu0 0.0
        %1351 = vmatpush1.msra.mxu0 0.0
        %1352 = vmatprep.subr.mxu0 0.0
        %1353 = vmatpush1.msra.mxu0 0.0
        %1354 = vmatprep.subr.mxu0 0.0
        %1355 = vmatpush1.msra.mxu0 0.0
        %1356 = vmatprep.subr.mxu0 0.0
        %1357 = vmatpush1.msra.mxu0 0.0
        %1358 = vmatprep.subr.mxu0 0.0
        %1359 = vmatpush1.msra.mxu0 0.0
        %1360 = vmatprep.subr.mxu0 0.0
        %1361 = vmatpush1.msra.mxu0 0.0
        %1362 = vmatprep.subr.mxu0 0.0
        %1363 = vmatpush1.msra.mxu0 0.0
        %1364 = vmatprep.subr.mxu0 0.0
        %1365 = vmatpush1.msra.mxu0 0.0
        %1366 = vmatprep.subr.mxu0 0.0
        %1367 = vmatpush1.msra.mxu0 0.0
        %1368 = vmatprep.subr.mxu0 0.0
        %1369 = vmatpush1.msra.mxu0 0.0
        %1370 = vmatprep.subr.mxu0 0.0
        %1371 = vmatpush1.msra.mxu0 0.0
        %1372 = vmatprep.subr.mxu0 0.0
        %1373 = vmatpush1.msra.mxu0 0.0
        %1374 = vmatprep.subr.mxu0 0.0
        %1375 = vmatpush1.msra.mxu0 0.0
        %1376 = vmatprep.subr.mxu0 0.0
        %1377 = vmatpush1.msra.mxu0 0.0
        %1378 = vmatprep.mubr.f32.mxu0 0.0
        %1379 = vmatmul.mubr.f32.gmra.mrb[0].mxu0 %v1312
        %v1380 = vpop.f32.mrb[0].mxu0
        %v1381 = vadd.f32 %v1308, %v1380
        %v1382 = vpop.f32.mrb[0].mxu0
        %1383 = vdwg.mxu0
        %v1384 = vmax.f32 %v1381, 0.0
        %v1385 = vadd.f32 %v1298, %v1384
        %1386 = vst.msk [vmem:[%s403] sm:$0xff] %vm1310, %v1385
        %s1387 = sand.u32 %s215, 1
        %s1388 = scalar_lea.sflag [#allocation4], %s1387
        %s1389 = sand.u32 %s215, 1
        %s1390 = smul.addr %s1389, 8
        %s1391 = scalar_lea.vmem [#allocation11], %s1390
        // Predicated region
        $region73: #{tpu_custom_call.1} parent=51 // pred_check
          %p1392 = pneg %p225
        $region74: #{tpu_custom_call.1} parent=51 // pred_check_branch
          %1394 = sbr.rel (%p1392) target = $region76
        $region75: #{tpu_custom_call.1} parent=51 // pred_region
          %s1396 = ssub.s32 128, 128
          %1397 = vsyncadd %s1388, %s1396
          %s1398 = smul.addr %s29, 128
          %s1399 = scalar_lea.hbm %s8, %s1398
          %s1401 = sshll.u32 %s1391, 4
          %s1402 = int_to_ptr.vmem [resolvable:$true] %s1401
          %1404 = dma.vmem_to_hbm [thread:$0]  %s1402, 128, %s1399, %s1388
        $region76: #{tpu_custom_call.1} parent=51 // pred_fallthru
          _
      $region52: #{tpu_custom_call.1} parent=5 // pred_fallthru
        _
      %p1405 = scmp.le.s32.totalorder 2, %s24
      // Predicated region
      $region77: #{tpu_custom_call.1} parent=5 // pred_check
        %p1406 = pneg %p1405
      $region78: #{tpu_custom_call.1} parent=5 // pred_check_branch
        %1408 = sbr.rel (%p1406) target = $region80
      $region79: #{tpu_custom_call.1} parent=5 // pred_region
        %s1409 = ssub.s32 %s24, 2
        // Predicated region
        $region81: #{tpu_custom_call.1} parent=79 // pred_check
          %p1410 = pneg %p231
        $region82: #{tpu_custom_call.1} parent=79 // pred_check_branch
          %1412 = sbr.rel (%p1410) target = $region84
        $region83: #{tpu_custom_call.1} parent=79 // pred_region
          %s1413 = sand.u32 %s216, 1
          %s1414 = scalar_lea.sflag [#allocation4], %s1413
          %s1415 = sand.u32 %s216, 1
          %s1416 = smul.addr %s1415, 8
          %s1417 = scalar_lea.vmem [#allocation11], %s1416
          %1418 = dma.done %s1414, 128
        $region84: #{tpu_custom_call.1} parent=79 // pred_fallthru
          _
      $region80: #{tpu_custom_call.1} parent=5 // pred_fallthru
        _
    $region6: #{tpu_custom_call.1} parent=1 // loop_footer
      %s28 = sadd.s32 1, %s24
    $region7: #{tpu_custom_call.1} parent=1 // loop_footer_branch
      %23 = sbr.rel target = $region3
    $region8: #{tpu_custom_call.1} parent=1 // loop_exit
      _
    %1419 = vsyncpa [#allocation3], 1
    %s1420 = scalar_lea.sflag [#allocation3], 1
    %1421 = vsyncpa %s1420, 1
    %1422 = vsyncpa [#allocation6], 1
    %s1423 = scalar_lea.sflag [#allocation6], 1
    %1424 = vsyncpa %s1423, 1
    %1425 = vsyncpa [#allocation9], 1
    %1426 = vsyncpa [#allocation4], 1
    %s1427 = scalar_lea.sflag [#allocation4], 1
    %1428 = vsyncpa %s1427, 1

</llo_original>
